<compile_context>
chip_gen: v7x
topology: tpu7x:2x2x1
jax: 0.10.0
libtpu: 0.0.40
codegen_flags: <defaults>
</compile_context>

<pallas_src>
import functools

import jax
import jax.numpy as jnp
from jax.experimental import pallas as pl
from jax.experimental.pallas import tpu as pltpu  # noqa: F401  (TPU backend)


def _lstm_classifier_kernel(x_ref, wih_ref, whh_ref, b_ref, wlin_ref, blin_ref,
                            out_ref, *, batch, seq_len, hidden_size):
    """x_ref:   (B*T, I)  batch-major rows (row index = b*T + t)
    wih_ref: (I, 4H)    whh_ref: (H, 4H)    b_ref: (1, 4H)   gate order [i,f,o,g]
    wlin_ref:(H, Opad)  blin_ref:(1, Opad)  out_ref:(B, Opad)."""
    B, T, H = batch, seq_len, hidden_size

    # One big GEMM for the input projection of every timestep; bias folded in.
    gx = (jnp.dot(x_ref[...], wih_ref[...], preferred_element_type=jnp.float32)
          + b_ref[...])                              # (B*T, 4H)
    gx = gx.reshape(B, T, 4 * H)                     # leading-dim split (layout-preserving)

    whh = whh_ref[...]                               # hoist recurrent weights out of the loop

    h = jnp.zeros((B, H), jnp.float32)
    c = jnp.zeros((B, H), jnp.float32)

    # Recurrence: fully unrolled at trace time (T static & small); h/c stay in
    # vregs so the only per-step MXU op is the small h @ Whh.
    for t in range(T):
        gates = gx[:, t, :] + jnp.dot(h, whh, preferred_element_type=jnp.float32)
        sig = jax.nn.sigmoid(gates[:, :3 * H])       # i | f | o as one EUP slab
        g_g = jnp.tanh(gates[:, 3 * H:])             # g
        i_g = sig[:, 0 * H:1 * H]
        f_g = sig[:, 1 * H:2 * H]
        o_g = sig[:, 2 * H:3 * H]
        c = f_g * c + i_g * g_g
        h = o_g * jnp.tanh(c)

    # Linear head on the last hidden state; lane-dense padded store.
    out_ref[...] = (
        jnp.dot(h, wlin_ref[...], preferred_element_type=jnp.float32)
        + blin_ref[...]
    ).astype(out_ref.dtype)


def _permute_ifgo_to_ifog(w, H):
    """Reorder PyTorch LSTM gate blocks [i, f, g, o] -> [i, f, o, g] (axis 0)."""
    return jnp.concatenate([w[:H], w[H:2 * H], w[3 * H:], w[2 * H:3 * H]], axis=0)


def classification_lstm_forward(x, params):
    """x: (B, T, I) float32 (PyTorch batch_first). Returns logits (B, O)."""
    B, T, I = x.shape
    H = params["weight_hh"].shape[1]          # weight_hh: (4H, H)
    O = params["w_lin"].shape[0]              # w_lin: (O, H)
    O_pad = ((O + 127) // 128) * 128          # lane-dense output block

    wih_t = _permute_ifgo_to_ifog(params["weight_ih"], H).T        # (I, 4H)
    whh_t = _permute_ifgo_to_ifog(params["weight_hh"], H).T        # (H, 4H)
    bias = _permute_ifgo_to_ifog(
        params["bias_ih"] + params["bias_hh"], H).reshape(1, 4 * H)

    wlin_pad = jnp.zeros((H, O_pad), jnp.float32).at[:, :O].set(params["w_lin"].T)
    blin_pad = jnp.zeros((1, O_pad), jnp.float32).at[:, :O].set(
        params["b_lin"].reshape(1, O))

    x2d = x.reshape(B * T, I)                 # contiguous flatten; no transpose pass

    kernel = functools.partial(_lstm_classifier_kernel,
                               batch=B, seq_len=T, hidden_size=H)

    out_pad = pl.pallas_call(
        kernel,
        out_shape=jax.ShapeDtypeStruct((B, O_pad), jnp.float32),
    )(x2d, wih_t, whh_t, bias, wlin_pad, blin_pad)
    # TODO(synk): at production sizes, add a T-grid (streamed x) and a parallel
    # batch grid axis (v7x 2nd TensorCore); unnecessary at these toy shapes.
    return out_pad[:, :O]


def _reference_forward(x, params):
    """Pure-JAX reference matching PyTorch nn.LSTM + nn.Linear semantics."""
    B, T, I = x.shape
    H = params["weight_hh"].shape[1]
    wih_t = params["weight_ih"].T
    whh_t = params["weight_hh"].T
    bias = params["bias_ih"] + params["bias_hh"]
    h = jnp.zeros((B, H), jnp.float32)
    c = jnp.zeros((B, H), jnp.float32)
    for t in range(T):
        gates = x[:, t, :] @ wih_t + h @ whh_t + bias
        i_g = jax.nn.sigmoid(gates[:, 0 * H:1 * H])
        f_g = jax.nn.sigmoid(gates[:, 1 * H:2 * H])
        g_g = jnp.tanh(gates[:, 2 * H:3 * H])
        o_g = jax.nn.sigmoid(gates[:, 3 * H:4 * H])
        c = f_g * c + i_g * g_g
        h = o_g * jnp.tanh(c)
    return h @ params["w_lin"].T + params["b_lin"]


if __name__ == "__main__":
    # Module hyperparameters (output_size = 5 classes, per bucket_to_class).
    B, T = 2, 8
    input_size, hidden_size, output_size = 16, 32, 5

    key = jax.random.PRNGKey(0)
    k_x, k_wih, k_whh, k_bih, k_bhh, k_wl, k_bl = jax.random.split(key, 7)

    bound = 1.0 / jnp.sqrt(hidden_size)   # PyTorch-style uniform init bound
    params = {
        "weight_ih": jax.random.uniform(k_wih, (4 * hidden_size, input_size),
                                        jnp.float32, -bound, bound),
        "weight_hh": jax.random.uniform(k_whh, (4 * hidden_size, hidden_size),
                                        jnp.float32, -bound, bound),
        "bias_ih": jax.random.uniform(k_bih, (4 * hidden_size,),
                                      jnp.float32, -bound, bound),
        "bias_hh": jax.random.uniform(k_bhh, (4 * hidden_size,),
                                      jnp.float32, -bound, bound),
        "w_lin": jax.random.uniform(k_wl, (output_size, hidden_size),
                                    jnp.float32, -bound, bound),
        "b_lin": jax.random.uniform(k_bl, (output_size,),
                                    jnp.float32, -bound, bound),
    }

    x = jax.random.normal(k_x, (B, T, input_size), jnp.float32)

    logits = jax.block_until_ready(classification_lstm_forward(x, params))
    ref = _reference_forward(x, params)

    assert logits.shape == (B, output_size)
    assert jnp.allclose(logits, ref, atol=2e-5, rtol=2e-5), (logits, ref)
    print("KERNEL_OK")
</pallas_src>

<mosaic_0001>
module attributes {stable_mosaic.version = 11 : i64} {
  func.func @_lstm_classifier_kernel(%arg0: memref<16x16xf32, #tpu.memory_space<vmem>>, %arg1: memref<16x128xf32, #tpu.memory_space<vmem>>, %arg2: memref<32x128xf32, #tpu.memory_space<vmem>>, %arg3: memref<1x128xf32, #tpu.memory_space<vmem>>, %arg4: memref<32x128xf32, #tpu.memory_space<vmem>>, %arg5: memref<1x128xf32, #tpu.memory_space<vmem>>, %arg6: memref<2x128xf32, #tpu.memory_space<vmem>>) attributes {dimension_semantics = [], scalar_prefetch = 0 : i64, scratch_operands = 0 : i64, tpu.core_type = #tpu.core_type<tc>} {
    %c0 = arith.constant 0 : index
    %c0_0 = arith.constant 0 : index
    %0 = vector.load %arg0[%c0, %c0_0] : memref<16x16xf32, #tpu.memory_space<vmem>>, vector<16x16xf32>
    %c0_1 = arith.constant 0 : index
    %c0_2 = arith.constant 0 : index
    %1 = vector.load %arg1[%c0_1, %c0_2] : memref<16x128xf32, #tpu.memory_space<vmem>>, vector<16x128xf32>
    %cst = arith.constant dense<0.000000e+00> : vector<16x128xf32>
    %2 = tpu.matmul %0, %1, %cst {dimension_numbers = #tpu.dot_dimension_numbers<[1], [0], [0], [1], [0, 0, 1, 1], [], []>} : vector<16x16xf32>, vector<16x128xf32>, vector<16x128xf32> -> vector<16x128xf32>
    %c0_3 = arith.constant 0 : index
    %c0_4 = arith.constant 0 : index
    %3 = vector.load %arg3[%c0_3, %c0_4] : memref<1x128xf32, #tpu.memory_space<vmem>>, vector<1x128xf32>
    %4 = vector.broadcast %3 : vector<1x128xf32> to vector<16x128xf32>
    %5 = arith.addf %2, %4 : vector<16x128xf32>
    %6 = vector.shape_cast %5 : vector<16x128xf32> to vector<2x8x128xf32>
    %c0_5 = arith.constant 0 : index
    %c0_6 = arith.constant 0 : index
    %7 = vector.load %arg2[%c0_5, %c0_6] : memref<32x128xf32, #tpu.memory_space<vmem>>, vector<32x128xf32>
    %cst_7 = arith.constant 0.000000e+00 : f32
    %8 = vector.broadcast %cst_7 : f32 to vector<2x32xf32>
    %cst_8 = arith.constant 0.000000e+00 : f32
    %9 = vector.broadcast %cst_8 : f32 to vector<2x32xf32>
    %10 = vector.extract_strided_slice %6 {offsets = [0, 0, 0], sizes = [2, 1, 128], strides = [1, 1, 1]} : vector<2x8x128xf32> to vector<2x1x128xf32>
    %11 = vector.shape_cast %10 : vector<2x1x128xf32> to vector<2x128xf32>
    %cst_9 = arith.constant dense<0.000000e+00> : vector<2x128xf32>
    %12 = tpu.matmul %8, %7, %cst_9 {dimension_numbers = #tpu.dot_dimension_numbers<[1], [0], [0], [1], [0, 0, 1, 1], [], []>} : vector<2x32xf32>, vector<32x128xf32>, vector<2x128xf32> -> vector<2x128xf32>
    %13 = arith.addf %11, %12 : vector<2x128xf32>
    %14 = vector.extract_strided_slice %13 {offsets = [0, 0], sizes = [2, 96], strides = [1, 1]} : vector<2x128xf32> to vector<2x96xf32>
    %15 = arith.negf %14 : vector<2x96xf32>
    %16 = math.exp %15 : vector<2x96xf32>
    %cst_10 = arith.constant 1.000000e+00 : f32
    %17 = vector.broadcast %cst_10 : f32 to vector<2x96xf32>
    %18 = arith.addf %17, %16 : vector<2x96xf32>
    %19 = arith.divf %17, %18 : vector<2x96xf32>
    %20 = vector.extract_strided_slice %13 {offsets = [0, 96], sizes = [2, 32], strides = [1, 1]} : vector<2x128xf32> to vector<2x32xf32>
    %21 = math.tanh %20 : vector<2x32xf32>
    %22 = vector.extract_strided_slice %19 {offsets = [0, 0], sizes = [2, 32], strides = [1, 1]} : vector<2x96xf32> to vector<2x32xf32>
    %23 = vector.extract_strided_slice %19 {offsets = [0, 32], sizes = [2, 32], strides = [1, 1]} : vector<2x96xf32> to vector<2x32xf32>
    %24 = vector.extract_strided_slice %19 {offsets = [0, 64], sizes = [2, 32], strides = [1, 1]} : vector<2x96xf32> to vector<2x32xf32>
    %25 = arith.mulf %23, %9 : vector<2x32xf32>
    %26 = arith.mulf %22, %21 : vector<2x32xf32>
    %27 = arith.addf %25, %26 : vector<2x32xf32>
    %28 = math.tanh %27 : vector<2x32xf32>
    %29 = arith.mulf %24, %28 : vector<2x32xf32>
    %30 = vector.extract_strided_slice %6 {offsets = [0, 1, 0], sizes = [2, 1, 128], strides = [1, 1, 1]} : vector<2x8x128xf32> to vector<2x1x128xf32>
    %31 = vector.shape_cast %30 : vector<2x1x128xf32> to vector<2x128xf32>
    %cst_11 = arith.constant dense<0.000000e+00> : vector<2x128xf32>
    %32 = tpu.matmul %29, %7, %cst_11 {dimension_numbers = #tpu.dot_dimension_numbers<[1], [0], [0], [1], [0, 0, 1, 1], [], []>} : vector<2x32xf32>, vector<32x128xf32>, vector<2x128xf32> -> vector<2x128xf32>
    %33 = arith.addf %31, %32 : vector<2x128xf32>
    %34 = vector.extract_strided_slice %33 {offsets = [0, 0], sizes = [2, 96], strides = [1, 1]} : vector<2x128xf32> to vector<2x96xf32>
    %35 = arith.negf %34 : vector<2x96xf32>
    %36 = math.exp %35 : vector<2x96xf32>
    %cst_12 = arith.constant 1.000000e+00 : f32
    %37 = vector.broadcast %cst_12 : f32 to vector<2x96xf32>
    %38 = arith.addf %37, %36 : vector<2x96xf32>
    %39 = arith.divf %37, %38 : vector<2x96xf32>
    %40 = vector.extract_strided_slice %33 {offsets = [0, 96], sizes = [2, 32], strides = [1, 1]} : vector<2x128xf32> to vector<2x32xf32>
    %41 = math.tanh %40 : vector<2x32xf32>
    %42 = vector.extract_strided_slice %39 {offsets = [0, 0], sizes = [2, 32], strides = [1, 1]} : vector<2x96xf32> to vector<2x32xf32>
    %43 = vector.extract_strided_slice %39 {offsets = [0, 32], sizes = [2, 32], strides = [1, 1]} : vector<2x96xf32> to vector<2x32xf32>
    %44 = vector.extract_strided_slice %39 {offsets = [0, 64], sizes = [2, 32], strides = [1, 1]} : vector<2x96xf32> to vector<2x32xf32>
    %45 = arith.mulf %43, %27 : vector<2x32xf32>
    %46 = arith.mulf %42, %41 : vector<2x32xf32>
    %47 = arith.addf %45, %46 : vector<2x32xf32>
    %48 = math.tanh %47 : vector<2x32xf32>
    %49 = arith.mulf %44, %48 : vector<2x32xf32>
    %50 = vector.extract_strided_slice %6 {offsets = [0, 2, 0], sizes = [2, 1, 128], strides = [1, 1, 1]} : vector<2x8x128xf32> to vector<2x1x128xf32>
    %51 = vector.shape_cast %50 : vector<2x1x128xf32> to vector<2x128xf32>
    %cst_13 = arith.constant dense<0.000000e+00> : vector<2x128xf32>
    %52 = tpu.matmul %49, %7, %cst_13 {dimension_numbers = #tpu.dot_dimension_numbers<[1], [0], [0], [1], [0, 0, 1, 1], [], []>} : vector<2x32xf32>, vector<32x128xf32>, vector<2x128xf32> -> vector<2x128xf32>
    %53 = arith.addf %51, %52 : vector<2x128xf32>
    %54 = vector.extract_strided_slice %53 {offsets = [0, 0], sizes = [2, 96], strides = [1, 1]} : vector<2x128xf32> to vector<2x96xf32>
    %55 = arith.negf %54 : vector<2x96xf32>
    %56 = math.exp %55 : vector<2x96xf32>
    %cst_14 = arith.constant 1.000000e+00 : f32
    %57 = vector.broadcast %cst_14 : f32 to vector<2x96xf32>
    %58 = arith.addf %57, %56 : vector<2x96xf32>
    %59 = arith.divf %57, %58 : vector<2x96xf32>
    %60 = vector.extract_strided_slice %53 {offsets = [0, 96], sizes = [2, 32], strides = [1, 1]} : vector<2x128xf32> to vector<2x32xf32>
    %61 = math.tanh %60 : vector<2x32xf32>
    %62 = vector.extract_strided_slice %59 {offsets = [0, 0], sizes = [2, 32], strides = [1, 1]} : vector<2x96xf32> to vector<2x32xf32>
    %63 = vector.extract_strided_slice %59 {offsets = [0, 32], sizes = [2, 32], strides = [1, 1]} : vector<2x96xf32> to vector<2x32xf32>
    %64 = vector.extract_strided_slice %59 {offsets = [0, 64], sizes = [2, 32], strides = [1, 1]} : vector<2x96xf32> to vector<2x32xf32>
    %65 = arith.mulf %63, %47 : vector<2x32xf32>
    %66 = arith.mulf %62, %61 : vector<2x32xf32>
    %67 = arith.addf %65, %66 : vector<2x32xf32>
    %68 = math.tanh %67 : vector<2x32xf32>
    %69 = arith.mulf %64, %68 : vector<2x32xf32>
    %70 = vector.extract_strided_slice %6 {offsets = [0, 3, 0], sizes = [2, 1, 128], strides = [1, 1, 1]} : vector<2x8x128xf32> to vector<2x1x128xf32>
    %71 = vector.shape_cast %70 : vector<2x1x128xf32> to vector<2x128xf32>
    %cst_15 = arith.constant dense<0.000000e+00> : vector<2x128xf32>
    %72 = tpu.matmul %69, %7, %cst_15 {dimension_numbers = #tpu.dot_dimension_numbers<[1], [0], [0], [1], [0, 0, 1, 1], [], []>} : vector<2x32xf32>, vector<32x128xf32>, vector<2x128xf32> -> vector<2x128xf32>
    %73 = arith.addf %71, %72 : vector<2x128xf32>
    %74 = vector.extract_strided_slice %73 {offsets = [0, 0], sizes = [2, 96], strides = [1, 1]} : vector<2x128xf32> to vector<2x96xf32>
    %75 = arith.negf %74 : vector<2x96xf32>
    %76 = math.exp %75 : vector<2x96xf32>
    %cst_16 = arith.constant 1.000000e+00 : f32
    %77 = vector.broadcast %cst_16 : f32 to vector<2x96xf32>
    %78 = arith.addf %77, %76 : vector<2x96xf32>
    %79 = arith.divf %77, %78 : vector<2x96xf32>
    %80 = vector.extract_strided_slice %73 {offsets = [0, 96], sizes = [2, 32], strides = [1, 1]} : vector<2x128xf32> to vector<2x32xf32>
    %81 = math.tanh %80 : vector<2x32xf32>
    %82 = vector.extract_strided_slice %79 {offsets = [0, 0], sizes = [2, 32], strides = [1, 1]} : vector<2x96xf32> to vector<2x32xf32>
    %83 = vector.extract_strided_slice %79 {offsets = [0, 32], sizes = [2, 32], strides = [1, 1]} : vector<2x96xf32> to vector<2x32xf32>
    %84 = vector.extract_strided_slice %79 {offsets = [0, 64], sizes = [2, 32], strides = [1, 1]} : vector<2x96xf32> to vector<2x32xf32>
    %85 = arith.mulf %83, %67 : vector<2x32xf32>
    %86 = arith.mulf %82, %81 : vector<2x32xf32>
    %87 = arith.addf %85, %86 : vector<2x32xf32>
    %88 = math.tanh %87 : vector<2x32xf32>
    %89 = arith.mulf %84, %88 : vector<2x32xf32>
    %90 = vector.extract_strided_slice %6 {offsets = [0, 4, 0], sizes = [2, 1, 128], strides = [1, 1, 1]} : vector<2x8x128xf32> to vector<2x1x128xf32>
    %91 = vector.shape_cast %90 : vector<2x1x128xf32> to vector<2x128xf32>
    %cst_17 = arith.constant dense<0.000000e+00> : vector<2x128xf32>
    %92 = tpu.matmul %89, %7, %cst_17 {dimension_numbers = #tpu.dot_dimension_numbers<[1], [0], [0], [1], [0, 0, 1, 1], [], []>} : vector<2x32xf32>, vector<32x128xf32>, vector<2x128xf32> -> vector<2x128xf32>
    %93 = arith.addf %91, %92 : vector<2x128xf32>
    %94 = vector.extract_strided_slice %93 {offsets = [0, 0], sizes = [2, 96], strides = [1, 1]} : vector<2x128xf32> to vector<2x96xf32>
    %95 = arith.negf %94 : vector<2x96xf32>
    %96 = math.exp %95 : vector<2x96xf32>
    %cst_18 = arith.constant 1.000000e+00 : f32
    %97 = vector.broadcast %cst_18 : f32 to vector<2x96xf32>
    %98 = arith.addf %97, %96 : vector<2x96xf32>
    %99 = arith.divf %97, %98 : vector<2x96xf32>
    %100 = vector.extract_strided_slice %93 {offsets = [0, 96], sizes = [2, 32], strides = [1, 1]} : vector<2x128xf32> to vector<2x32xf32>
    %101 = math.tanh %100 : vector<2x32xf32>
    %102 = vector.extract_strided_slice %99 {offsets = [0, 0], sizes = [2, 32], strides = [1, 1]} : vector<2x96xf32> to vector<2x32xf32>
    %103 = vector.extract_strided_slice %99 {offsets = [0, 32], sizes = [2, 32], strides = [1, 1]} : vector<2x96xf32> to vector<2x32xf32>
    %104 = vector.extract_strided_slice %99 {offsets = [0, 64], sizes = [2, 32], strides = [1, 1]} : vector<2x96xf32> to vector<2x32xf32>
    %105 = arith.mulf %103, %87 : vector<2x32xf32>
    %106 = arith.mulf %102, %101 : vector<2x32xf32>
    %107 = arith.addf %105, %106 : vector<2x32xf32>
    %108 = math.tanh %107 : vector<2x32xf32>
    %109 = arith.mulf %104, %108 : vector<2x32xf32>
    %110 = vector.extract_strided_slice %6 {offsets = [0, 5, 0], sizes = [2, 1, 128], strides = [1, 1, 1]} : vector<2x8x128xf32> to vector<2x1x128xf32>
    %111 = vector.shape_cast %110 : vector<2x1x128xf32> to vector<2x128xf32>
    %cst_19 = arith.constant dense<0.000000e+00> : vector<2x128xf32>
    %112 = tpu.matmul %109, %7, %cst_19 {dimension_numbers = #tpu.dot_dimension_numbers<[1], [0], [0], [1], [0, 0, 1, 1], [], []>} : vector<2x32xf32>, vector<32x128xf32>, vector<2x128xf32> -> vector<2x128xf32>
    %113 = arith.addf %111, %112 : vector<2x128xf32>
    %114 = vector.extract_strided_slice %113 {offsets = [0, 0], sizes = [2, 96], strides = [1, 1]} : vector<2x128xf32> to vector<2x96xf32>
    %115 = arith.negf %114 : vector<2x96xf32>
    %116 = math.exp %115 : vector<2x96xf32>
    %cst_20 = arith.constant 1.000000e+00 : f32
    %117 = vector.broadcast %cst_20 : f32 to vector<2x96xf32>
    %118 = arith.addf %117, %116 : vector<2x96xf32>
    %119 = arith.divf %117, %118 : vector<2x96xf32>
    %120 = vector.extract_strided_slice %113 {offsets = [0, 96], sizes = [2, 32], strides = [1, 1]} : vector<2x128xf32> to vector<2x32xf32>
    %121 = math.tanh %120 : vector<2x32xf32>
    %122 = vector.extract_strided_slice %119 {offsets = [0, 0], sizes = [2, 32], strides = [1, 1]} : vector<2x96xf32> to vector<2x32xf32>
    %123 = vector.extract_strided_slice %119 {offsets = [0, 32], sizes = [2, 32], strides = [1, 1]} : vector<2x96xf32> to vector<2x32xf32>
    %124 = vector.extract_strided_slice %119 {offsets = [0, 64], sizes = [2, 32], strides = [1, 1]} : vector<2x96xf32> to vector<2x32xf32>
    %125 = arith.mulf %123, %107 : vector<2x32xf32>
    %126 = arith.mulf %122, %121 : vector<2x32xf32>
    %127 = arith.addf %125, %126 : vector<2x32xf32>
    %128 = math.tanh %127 : vector<2x32xf32>
    %129 = arith.mulf %124, %128 : vector<2x32xf32>
    %130 = vector.extract_strided_slice %6 {offsets = [0, 6, 0], sizes = [2, 1, 128], strides = [1, 1, 1]} : vector<2x8x128xf32> to vector<2x1x128xf32>
    %131 = vector.shape_cast %130 : vector<2x1x128xf32> to vector<2x128xf32>
    %cst_21 = arith.constant dense<0.000000e+00> : vector<2x128xf32>
    %132 = tpu.matmul %129, %7, %cst_21 {dimension_numbers = #tpu.dot_dimension_numbers<[1], [0], [0], [1], [0, 0, 1, 1], [], []>} : vector<2x32xf32>, vector<32x128xf32>, vector<2x128xf32> -> vector<2x128xf32>
    %133 = arith.addf %131, %132 : vector<2x128xf32>
    %134 = vector.extract_strided_slice %133 {offsets = [0, 0], sizes = [2, 96], strides = [1, 1]} : vector<2x128xf32> to vector<2x96xf32>
    %135 = arith.negf %134 : vector<2x96xf32>
    %136 = math.exp %135 : vector<2x96xf32>
    %cst_22 = arith.constant 1.000000e+00 : f32
    %137 = vector.broadcast %cst_22 : f32 to vector<2x96xf32>
    %138 = arith.addf %137, %136 : vector<2x96xf32>
    %139 = arith.divf %137, %138 : vector<2x96xf32>
    %140 = vector.extract_strided_slice %133 {offsets = [0, 96], sizes = [2, 32], strides = [1, 1]} : vector<2x128xf32> to vector<2x32xf32>
    %141 = math.tanh %140 : vector<2x32xf32>
    %142 = vector.extract_strided_slice %139 {offsets = [0, 0], sizes = [2, 32], strides = [1, 1]} : vector<2x96xf32> to vector<2x32xf32>
    %143 = vector.extract_strided_slice %139 {offsets = [0, 32], sizes = [2, 32], strides = [1, 1]} : vector<2x96xf32> to vector<2x32xf32>
    %144 = vector.extract_strided_slice %139 {offsets = [0, 64], sizes = [2, 32], strides = [1, 1]} : vector<2x96xf32> to vector<2x32xf32>
    %145 = arith.mulf %143, %127 : vector<2x32xf32>
    %146 = arith.mulf %142, %141 : vector<2x32xf32>
    %147 = arith.addf %145, %146 : vector<2x32xf32>
    %148 = math.tanh %147 : vector<2x32xf32>
    %149 = arith.mulf %144, %148 : vector<2x32xf32>
    %150 = vector.extract_strided_slice %6 {offsets = [0, 7, 0], sizes = [2, 1, 128], strides = [1, 1, 1]} : vector<2x8x128xf32> to vector<2x1x128xf32>
    %151 = vector.shape_cast %150 : vector<2x1x128xf32> to vector<2x128xf32>
    %cst_23 = arith.constant dense<0.000000e+00> : vector<2x128xf32>
    %152 = tpu.matmul %149, %7, %cst_23 {dimension_numbers = #tpu.dot_dimension_numbers<[1], [0], [0], [1], [0, 0, 1, 1], [], []>} : vector<2x32xf32>, vector<32x128xf32>, vector<2x128xf32> -> vector<2x128xf32>
    %153 = arith.addf %151, %152 : vector<2x128xf32>
    %154 = vector.extract_strided_slice %153 {offsets = [0, 0], sizes = [2, 96], strides = [1, 1]} : vector<2x128xf32> to vector<2x96xf32>
    %155 = arith.negf %154 : vector<2x96xf32>
    %156 = math.exp %155 : vector<2x96xf32>
    %cst_24 = arith.constant 1.000000e+00 : f32
    %157 = vector.broadcast %cst_24 : f32 to vector<2x96xf32>
    %158 = arith.addf %157, %156 : vector<2x96xf32>
    %159 = arith.divf %157, %158 : vector<2x96xf32>
    %160 = vector.extract_strided_slice %153 {offsets = [0, 96], sizes = [2, 32], strides = [1, 1]} : vector<2x128xf32> to vector<2x32xf32>
    %161 = math.tanh %160 : vector<2x32xf32>
    %162 = vector.extract_strided_slice %159 {offsets = [0, 0], sizes = [2, 32], strides = [1, 1]} : vector<2x96xf32> to vector<2x32xf32>
    %163 = vector.extract_strided_slice %159 {offsets = [0, 32], sizes = [2, 32], strides = [1, 1]} : vector<2x96xf32> to vector<2x32xf32>
    %164 = vector.extract_strided_slice %159 {offsets = [0, 64], sizes = [2, 32], strides = [1, 1]} : vector<2x96xf32> to vector<2x32xf32>
    %165 = arith.mulf %163, %147 : vector<2x32xf32>
    %166 = arith.mulf %162, %161 : vector<2x32xf32>
    %167 = arith.addf %165, %166 : vector<2x32xf32>
    %168 = math.tanh %167 : vector<2x32xf32>
    %169 = arith.mulf %164, %168 : vector<2x32xf32>
    %c0_25 = arith.constant 0 : index
    %c0_26 = arith.constant 0 : index
    %170 = vector.load %arg4[%c0_25, %c0_26] : memref<32x128xf32, #tpu.memory_space<vmem>>, vector<32x128xf32>
    %cst_27 = arith.constant dense<0.000000e+00> : vector<2x128xf32>
    %171 = tpu.matmul %169, %170, %cst_27 {dimension_numbers = #tpu.dot_dimension_numbers<[1], [0], [0], [1], [0, 0, 1, 1], [], []>} : vector<2x32xf32>, vector<32x128xf32>, vector<2x128xf32> -> vector<2x128xf32>
    %c0_28 = arith.constant 0 : index
    %c0_29 = arith.constant 0 : index
    %172 = vector.load %arg5[%c0_28, %c0_29] : memref<1x128xf32, #tpu.memory_space<vmem>>, vector<1x128xf32>
    %173 = vector.broadcast %172 : vector<1x128xf32> to vector<2x128xf32>
    %174 = arith.addf %171, %173 : vector<2x128xf32>
    %c0_30 = arith.constant 0 : index
    %c0_31 = arith.constant 0 : index
    %175 = vector.load %arg6[%c0_30, %c0_31] : memref<2x128xf32, #tpu.memory_space<vmem>>, vector<2x128xf32>
    tpu.vector_store %arg6[%c0_30, %c0_31], %174 {strides = array<i32>} : memref<2x128xf32, #tpu.memory_space<vmem>>, vector<2x128xf32>,
    return
  }
}

</mosaic_0001>

<llo_original>
// kernel: tpu_custom_call.1
$region0: #{tpu_custom_call.1}
  #allocation0 [shape = 'u32[]', space=smem, size = 0x4, offset = 0x4, fixed_abs, tag = 'smem constant byte address 0x4 - core index']
  #allocation1 [shape = 'u32[144,128]{1,0:T(1,128)}', space=vmem, size = 0x12000, scoped, tag = 'internal scratch']
  %s0 = inlined_call_operand.hbm [shape: f32[16,16], index: 0, kind: input, shape index: {}]
  %s1 = inlined_call_operand.hbm [shape: f32[16,128], index: 1, kind: input, shape index: {}]
  %s2 = inlined_call_operand.hbm [shape: f32[32,128], index: 2, kind: input, shape index: {}]
  %s3 = inlined_call_operand.vmem [shape: f32[1,128], index: 3, kind: input, shape index: {}]
  %s4 = inlined_call_operand.hbm [shape: f32[32,128], index: 4, kind: input, shape index: {}]
  %s5 = inlined_call_operand.vmem [shape: f32[1,128], index: 5, kind: input, shape index: {}]
  %s6 = inlined_call_operand.hbm [shape: f32[2,128], index: 6, kind: output, shape index: {}]
  %s7 = sld [smem:[#allocation0]]
  $region50: #{tpu_custom_call.1} parent=0
    _
  %s9 = ssub.s32 1, %s7
  %s10 = scalar_select 0, %s9, %s7
  $region1: #{tpu_custom_call.1} parent=0
    #allocation2 [shape = 'u8[8192]{0}', space=vmem, size = 0x2000, scoped, tag = 'input window, operand 0, single buffered']
    #allocation3 [shape = 's32[1]{0}', space=sflag, size = 0x4, scoped, tag = 'scoped memory for tpu_custom_call.1']
    #allocation4 [shape = 's32[1]{0}', space=sflag, size = 0x4, scoped, tag = 'scoped memory for tpu_custom_call.1']
    #allocation5 [shape = 'u8[8192]{0}', space=vmem, size = 0x2000, scoped, tag = 'input window, operand 1, single buffered']
    #allocation6 [shape = 's32[1]{0}', space=sflag, size = 0x4, scoped, tag = 'scoped memory for tpu_custom_call.1']
    #allocation7 [shape = 'u8[16384]{0}', space=vmem, size = 0x4000, scoped, tag = 'input window, operand 2, single buffered']
    #allocation8 [shape = 'u8[16384]{0}', space=vmem, size = 0x4000, scoped, tag = 'input window, operand 4, single buffered']
    #allocation9 [shape = 's32[1]{0}', space=sflag, size = 0x4, scoped, tag = 'scoped memory for tpu_custom_call.1']
    #allocation10 [shape = 'u8[1024]{0}', space=vmem, size = 0x400, scoped, tag = 'output window, operand 0, single buffered']
    %11 = vsyncpa [#allocation3], 0
    %12 = vsyncpa [#allocation6], 0
    %13 = vsyncpa [#allocation9], 0
    %14 = vsyncpa [#allocation4], 0
    // Predicated region
    $region2: #{tpu_custom_call.1} parent=1 // pred_check
      _
    $region3: #{tpu_custom_call.1} parent=1 // pred_check_branch
      %16 = sbr.rel (0) target = $region5
    $region4: #{tpu_custom_call.1} parent=1 // pred_region
      %s18 = ssub.s32 256, 256
      %19 = vsyncadd [#allocation3], %s18
      %s20 = sshll.u32 [#allocation2], 4
      %s21 = int_to_ptr.vmem [resolvable:$true] %s20
      %26 = dma.hbm_to_vmem [thread:$0]  %s0, 256, %s21, [#allocation3], 128, 128, 8
    $region5: #{tpu_custom_call.1} parent=1 // pred_fallthru
      _
    // Predicated region
    $region6: #{tpu_custom_call.1} parent=1 // pred_check
      _
    $region7: #{tpu_custom_call.1} parent=1 // pred_check_branch
      %28 = sbr.rel (0) target = $region9
    $region8: #{tpu_custom_call.1} parent=1 // pred_region
      %s30 = ssub.s32 256, 256
      %31 = vsyncadd [#allocation6], %s30
      %s32 = sshll.u32 [#allocation5], 4
      %s33 = int_to_ptr.vmem [resolvable:$true] %s32
      %38 = dma.hbm_to_vmem [thread:$0]  %s1, 256, %s33, [#allocation6], 128, 128, 8
    $region9: #{tpu_custom_call.1} parent=1 // pred_fallthru
      _
    // Predicated region
    $region10: #{tpu_custom_call.1} parent=1 // pred_check
      _
    $region11: #{tpu_custom_call.1} parent=1 // pred_check_branch
      %40 = sbr.rel (0) target = $region13
    $region12: #{tpu_custom_call.1} parent=1 // pred_region
      %s42 = ssub.s32 512, 512
      %43 = vsyncadd [#allocation6], %s42
      %s44 = sshll.u32 [#allocation7], 4
      %s45 = int_to_ptr.vmem [resolvable:$true] %s44
      %50 = dma.hbm_to_vmem [thread:$0]  %s2, 512, %s45, [#allocation6], 128, 128, 8
    $region13: #{tpu_custom_call.1} parent=1 // pred_fallthru
      _
    // Predicated region
    $region14: #{tpu_custom_call.1} parent=1 // pred_check
      _
    $region15: #{tpu_custom_call.1} parent=1 // pred_check_branch
      %52 = sbr.rel (0) target = $region17
    $region16: #{tpu_custom_call.1} parent=1 // pred_region
      _
    $region17: #{tpu_custom_call.1} parent=1 // pred_fallthru
      _
    // Predicated region
    $region18: #{tpu_custom_call.1} parent=1 // pred_check
      _
    $region19: #{tpu_custom_call.1} parent=1 // pred_check_branch
      %54 = sbr.rel (0) target = $region21
    $region20: #{tpu_custom_call.1} parent=1 // pred_region
      %s56 = ssub.s32 512, 512
      %57 = vsyncadd [#allocation9], %s56
      %s58 = sshll.u32 [#allocation8], 4
      %s59 = int_to_ptr.vmem [resolvable:$true] %s58
      %64 = dma.hbm_to_vmem [thread:$0]  %s4, 512, %s59, [#allocation9], 128, 128, 8
    $region21: #{tpu_custom_call.1} parent=1 // pred_fallthru
      _
    // Predicated region
    $region22: #{tpu_custom_call.1} parent=1 // pred_check
      _
    $region23: #{tpu_custom_call.1} parent=1 // pred_check_branch
      %66 = sbr.rel (0) target = $region25
    $region24: #{tpu_custom_call.1} parent=1 // pred_region
      _
    $region25: #{tpu_custom_call.1} parent=1 // pred_fallthru
      _
    // Predicated region
    $region26: #{tpu_custom_call.1} parent=1 // pred_check
      _
    $region27: #{tpu_custom_call.1} parent=1 // pred_check_branch
      %68 = sbr.rel (0) target = $region29
    $region28: #{tpu_custom_call.1} parent=1 // pred_region
      %69 = dma.done [#allocation3], 256
    $region29: #{tpu_custom_call.1} parent=1 // pred_fallthru
      _
    // Predicated region
    $region30: #{tpu_custom_call.1} parent=1 // pred_check
      _
    $region31: #{tpu_custom_call.1} parent=1 // pred_check_branch
      %71 = sbr.rel (0) target = $region33
    $region32: #{tpu_custom_call.1} parent=1 // pred_region
      %72 = dma.done [#allocation6], 256
    $region33: #{tpu_custom_call.1} parent=1 // pred_fallthru
      _
    // Predicated region
    $region34: #{tpu_custom_call.1} parent=1 // pred_check
      _
    $region35: #{tpu_custom_call.1} parent=1 // pred_check_branch
      %74 = sbr.rel (0) target = $region37
    $region36: #{tpu_custom_call.1} parent=1 // pred_region
      %75 = dma.done [#allocation6], 512
    $region37: #{tpu_custom_call.1} parent=1 // pred_fallthru
      _
    // Predicated region
    $region38: #{tpu_custom_call.1} parent=1 // pred_check
      _
    $region39: #{tpu_custom_call.1} parent=1 // pred_check_branch
      %77 = sbr.rel (0) target = $region41
    $region40: #{tpu_custom_call.1} parent=1 // pred_region
      %78 = dma.done [#allocation9], 512
    $region41: #{tpu_custom_call.1} parent=1 // pred_fallthru
      _
    %v79 = vld [vmem:[#allocation2] sm:$0xff]
    %v80 = vld [vmem:[#allocation2 + $0x8] sm:$0xff]
    %v81 = vld [vmem:[#allocation5] sm:$0xff]
    %v82 = vld [vmem:[#allocation5 + $0x8] sm:$0xff]
    %v83 = vld [vmem:[%s3] sm:$0x1]
    %v85 = vlaneseq
    %v86 = vshrl.u32 %v85, 7
    %v87 = vsub.s32 0, %v86
    %v88 = vrot.slane %v83, %v87
    %vm90 = vcmask 130048
    %v92 = vsel %vm90, %v79, 0
    %v95 = vsel %vm90, %v80, 0
    %97 = vmatprep.subr.mxu0 0.0
    %98 = vmatpush1.msra.mxu0 %v81
    %99 = vmatprep.subr.mxu0 0.0
    %100 = vmatpush1.msra.mxu0 %v82
    %101 = vmatprep.subr.mxu0 0.0
    %102 = vmatpush1.msra.mxu0 0.0
    %103 = vmatprep.subr.mxu0 0.0
    %104 = vmatpush1.msra.mxu0 0.0
    %105 = vmatprep.subr.mxu0 0.0
    %106 = vmatpush1.msra.mxu0 0.0
    %107 = vmatprep.subr.mxu0 0.0
    %108 = vmatpush1.msra.mxu0 0.0
    %109 = vmatprep.subr.mxu0 0.0
    %110 = vmatpush1.msra.mxu0 0.0
    %111 = vmatprep.subr.mxu0 0.0
    %112 = vmatpush1.msra.mxu0 0.0
    %113 = vmatprep.subr.mxu0 0.0
    %114 = vmatpush1.msra.mxu0 0.0
    %115 = vmatprep.subr.mxu0 0.0
    %116 = vmatpush1.msra.mxu0 0.0
    %117 = vmatprep.subr.mxu0 0.0
    %118 = vmatpush1.msra.mxu0 0.0
    %119 = vmatprep.subr.mxu0 0.0
    %120 = vmatpush1.msra.mxu0 0.0
    %121 = vmatprep.subr.mxu0 0.0
    %122 = vmatpush1.msra.mxu0 0.0
    %123 = vmatprep.subr.mxu0 0.0
    %124 = vmatpush1.msra.mxu0 0.0
    %125 = vmatprep.subr.mxu0 0.0
    %126 = vmatpush1.msra.mxu0 0.0
    %127 = vmatprep.subr.mxu0 0.0
    %128 = vmatpush1.msra.mxu0 0.0
    %129 = vmatprep.subr.mxu0 0.0
    %130 = vmatpush1.msra.mxu0 0.0
    %131 = vmatprep.subr.mxu0 0.0
    %132 = vmatpush1.msra.mxu0 0.0
    %133 = vmatprep.subr.mxu0 0.0
    %134 = vmatpush1.msra.mxu0 0.0
    %135 = vmatprep.subr.mxu0 0.0
    %136 = vmatpush1.msra.mxu0 0.0
    %137 = vmatprep.subr.mxu0 0.0
    %138 = vmatpush1.msra.mxu0 0.0
    %139 = vmatprep.subr.mxu0 0.0
    %140 = vmatpush1.msra.mxu0 0.0
    %141 = vmatprep.subr.mxu0 0.0
    %142 = vmatpush1.msra.mxu0 0.0
    %143 = vmatprep.subr.mxu0 0.0
    %144 = vmatpush1.msra.mxu0 0.0
    %145 = vmatprep.subr.mxu0 0.0
    %146 = vmatpush1.msra.mxu0 0.0
    %147 = vmatprep.subr.mxu0 0.0
    %148 = vmatpush1.msra.mxu0 0.0
    %149 = vmatprep.subr.mxu0 0.0
    %150 = vmatpush1.msra.mxu0 0.0
    %151 = vmatprep.subr.mxu0 0.0
    %152 = vmatpush1.msra.mxu0 0.0
    %153 = vmatprep.subr.mxu0 0.0
    %154 = vmatpush1.msra.mxu0 0.0
    %155 = vmatprep.subr.mxu0 0.0
    %156 = vmatpush1.msra.mxu0 0.0
    %157 = vmatprep.subr.mxu0 0.0
    %158 = vmatpush1.msra.mxu0 0.0
    %159 = vmatprep.subr.mxu0 0.0
    %160 = vmatpush1.msra.mxu0 0.0
    %161 = vmatprep.mubr.f32.mxu0 0.0
    %162 = vmatmul.mubr.f32.gmra.mrb[0].mxu0 %v92
    %v163 = vpop.f32.mrb[0].mxu0
    %v164 = vadd.f32 %v88, %v163
    %v165 = vpop.f32.mrb[0].mxu0
    %166 = vmatprep.mubr.f32.mxu0 0.0
    %167 = vmatmul.mubr.f32.gmra.mrb[0].mxu0 %v95
    %v168 = vpop.f32.mrb[0].mxu0
    %v169 = vadd.f32 %v88, %v168
    %v170 = vpop.f32.mrb[0].mxu0
    %171 = vdwg.mxu0
    %v172 = vld [vmem:[#allocation7] sm:$0xff]
    %v173 = vld [vmem:[#allocation7 + $0x8] sm:$0xff]
    %v174 = vld [vmem:[#allocation7 + $0x10] sm:$0xff]
    %v175 = vld [vmem:[#allocation7 + $0x18] sm:$0xff]
    %vm176 = vcmask 261120
    %v178 = vsel %vm176, 0.0, 0
    %180 = vmatprep.subr.mxu0 0.0
    %181 = vmatpush1.msra.mxu0 %v172
    %182 = vmatprep.subr.mxu0 0.0
    %183 = vmatpush1.msra.mxu0 %v173
    %184 = vmatprep.subr.mxu0 0.0
    %185 = vmatpush1.msra.mxu0 %v174
    %186 = vmatprep.subr.mxu0 0.0
    %187 = vmatpush1.msra.mxu0 %v175
    %188 = vmatprep.subr.mxu0 0.0
    %189 = vmatpush1.msra.mxu0 0.0
    %190 = vmatprep.subr.mxu0 0.0
    %191 = vmatpush1.msra.mxu0 0.0
    %192 = vmatprep.subr.mxu0 0.0
    %193 = vmatpush1.msra.mxu0 0.0
    %194 = vmatprep.subr.mxu0 0.0
    %195 = vmatpush1.msra.mxu0 0.0
    %196 = vmatprep.subr.mxu0 0.0
    %197 = vmatpush1.msra.mxu0 0.0
    %198 = vmatprep.subr.mxu0 0.0
    %199 = vmatpush1.msra.mxu0 0.0
    %200 = vmatprep.subr.mxu0 0.0
    %201 = vmatpush1.msra.mxu0 0.0
    %202 = vmatprep.subr.mxu0 0.0
    %203 = vmatpush1.msra.mxu0 0.0
    %204 = vmatprep.subr.mxu0 0.0
    %205 = vmatpush1.msra.mxu0 0.0
    %206 = vmatprep.subr.mxu0 0.0
    %207 = vmatpush1.msra.mxu0 0.0
    %208 = vmatprep.subr.mxu0 0.0
    %209 = vmatpush1.msra.mxu0 0.0
    %210 = vmatprep.subr.mxu0 0.0
    %211 = vmatpush1.msra.mxu0 0.0
    %212 = vmatprep.subr.mxu0 0.0
    %213 = vmatpush1.msra.mxu0 0.0
    %214 = vmatprep.subr.mxu0 0.0
    %215 = vmatpush1.msra.mxu0 0.0
    %216 = vmatprep.subr.mxu0 0.0
    %217 = vmatpush1.msra.mxu0 0.0
    %218 = vmatprep.subr.mxu0 0.0
    %219 = vmatpush1.msra.mxu0 0.0
    %220 = vmatprep.subr.mxu0 0.0
    %221 = vmatpush1.msra.mxu0 0.0
    %222 = vmatprep.subr.mxu0 0.0
    %223 = vmatpush1.msra.mxu0 0.0
    %224 = vmatprep.subr.mxu0 0.0
    %225 = vmatpush1.msra.mxu0 0.0
    %226 = vmatprep.subr.mxu0 0.0
    %227 = vmatpush1.msra.mxu0 0.0
    %228 = vmatprep.subr.mxu0 0.0
    %229 = vmatpush1.msra.mxu0 0.0
    %230 = vmatprep.subr.mxu0 0.0
    %231 = vmatpush1.msra.mxu0 0.0
    %232 = vmatprep.subr.mxu0 0.0
    %233 = vmatpush1.msra.mxu0 0.0
    %234 = vmatprep.subr.mxu0 0.0
    %235 = vmatpush1.msra.mxu0 0.0
    %236 = vmatprep.subr.mxu0 0.0
    %237 = vmatpush1.msra.mxu0 0.0
    %238 = vmatprep.subr.mxu0 0.0
    %239 = vmatpush1.msra.mxu0 0.0
    %240 = vmatprep.subr.mxu0 0.0
    %241 = vmatpush1.msra.mxu0 0.0
    %242 = vmatprep.subr.mxu0 0.0
    %243 = vmatpush1.msra.mxu0 0.0
    %244 = vmatprep.mubr.f32.mxu0 0.0
    %245 = vmatmul.mubr.f32.gmra.mrb[0].mxu0 %v178
    %v246 = vpop.f32.mrb[0].mxu0
    %v247 = vadd.f32 0.0, %v246
    %v248 = vpop.f32.mrb[0].mxu0
    %249 = vdwg.mxu0
    %v251 = vrot.slane %v247, 1
    %v254 = vadd.f32 %v164, %v247
    %v255 = vadd.f32 %v169, %v251
    %v256 = vxor.u32 %v254, 2147483648
    %v257 = vxor.u32 %v255, 2147483648
    %v258 = vmul.f32 %v256, 1.442695
    %v259 = vpow.pop %v258
    %v260 = vmul.f32 %v257, 1.442695
    %v261 = vpow.pop %v260
    %v262 = vadd.f32 %v259, 1.0
    %v263 = vadd.f32 %v261, 1.0
    %v264 = vrcp.pop %v262
    %v265 = vmul.f32 1.0, %v264
    %v266 = vrcp.pop %v263
    %v267 = vmul.f32 1.0, %v266
    %v268 = vtanh.pop %v254
    %v269 = vtanh.pop %v255
    %v270 = vmul.f32 %v265, 0.0
    %v271 = vmul.f32 %v267, 0.0
    %274 = vrot.lane.b32.xlu0 %v268, 32
    %v275 = vpop.permute.xlu0 %274
    %276 = vrot.lane.b32.xlu0 %v269, 32
    %v277 = vpop.permute.xlu0 %276
    %v280 = vmul.f32 %v265, %v275
    %v281 = vmul.f32 %v267, %v277
    %284 = vrot.lane.b32.xlu0 %v280, 32
    %v285 = vpop.permute.xlu0 %284
    %286 = vrot.lane.b32.xlu0 %v281, 32
    %v287 = vpop.permute.xlu0 %286
    %v290 = vadd.f32 %v270, %v285
    %v291 = vadd.f32 %v271, %v287
    %v292 = vtanh.pop %v290
    %v293 = vtanh.pop %v291
    %296 = vrot.lane.b32.xlu0 %v292, 32
    %v297 = vpop.permute.xlu0 %296
    %298 = vrot.lane.b32.xlu0 %v293, 32
    %v299 = vpop.permute.xlu0 %298
    %v302 = vmul.f32 %v265, %v297
    %v303 = vmul.f32 %v267, %v299
    %v306 = vrot.slane %v303, 7
    %vm307 = vcmask 1041409
    %v308 = vsel %vm307, %v306, %v302
    %309 = vrot.lane.b32.xlu0 %v308, 64
    %v310 = vpop.permute.xlu0 %309
    %v311 = vsel %vm176, %v310, 0
    %313 = vmatprep.subr.mxu0 0.0
    %314 = vmatpush1.msra.mxu0 %v172
    %315 = vmatprep.subr.mxu0 0.0
    %316 = vmatpush1.msra.mxu0 %v173
    %317 = vmatprep.subr.mxu0 0.0
    %318 = vmatpush1.msra.mxu0 %v174
    %319 = vmatprep.subr.mxu0 0.0
    %320 = vmatpush1.msra.mxu0 %v175
    %321 = vmatprep.subr.mxu0 0.0
    %322 = vmatpush1.msra.mxu0 0.0
    %323 = vmatprep.subr.mxu0 0.0
    %324 = vmatpush1.msra.mxu0 0.0
    %325 = vmatprep.subr.mxu0 0.0
    %326 = vmatpush1.msra.mxu0 0.0
    %327 = vmatprep.subr.mxu0 0.0
    %328 = vmatpush1.msra.mxu0 0.0
    %329 = vmatprep.subr.mxu0 0.0
    %330 = vmatpush1.msra.mxu0 0.0
    %331 = vmatprep.subr.mxu0 0.0
    %332 = vmatpush1.msra.mxu0 0.0
    %333 = vmatprep.subr.mxu0 0.0
    %334 = vmatpush1.msra.mxu0 0.0
    %335 = vmatprep.subr.mxu0 0.0
    %336 = vmatpush1.msra.mxu0 0.0
    %337 = vmatprep.subr.mxu0 0.0
    %338 = vmatpush1.msra.mxu0 0.0
    %339 = vmatprep.subr.mxu0 0.0
    %340 = vmatpush1.msra.mxu0 0.0
    %341 = vmatprep.subr.mxu0 0.0
    %342 = vmatpush1.msra.mxu0 0.0
    %343 = vmatprep.subr.mxu0 0.0
    %344 = vmatpush1.msra.mxu0 0.0
    %345 = vmatprep.subr.mxu0 0.0
    %346 = vmatpush1.msra.mxu0 0.0
    %347 = vmatprep.subr.mxu0 0.0
    %348 = vmatpush1.msra.mxu0 0.0
    %349 = vmatprep.subr.mxu0 0.0
    %350 = vmatpush1.msra.mxu0 0.0
    %351 = vmatprep.subr.mxu0 0.0
    %352 = vmatpush1.msra.mxu0 0.0
    %353 = vmatprep.subr.mxu0 0.0
    %354 = vmatpush1.msra.mxu0 0.0
    %355 = vmatprep.subr.mxu0 0.0
    %356 = vmatpush1.msra.mxu0 0.0
    %357 = vmatprep.subr.mxu0 0.0
    %358 = vmatpush1.msra.mxu0 0.0
    %359 = vmatprep.subr.mxu0 0.0
    %360 = vmatpush1.msra.mxu0 0.0
    %361 = vmatprep.subr.mxu0 0.0
    %362 = vmatpush1.msra.mxu0 0.0
    %363 = vmatprep.subr.mxu0 0.0
    %364 = vmatpush1.msra.mxu0 0.0
    %365 = vmatprep.subr.mxu0 0.0
    %366 = vmatpush1.msra.mxu0 0.0
    %367 = vmatprep.subr.mxu0 0.0
    %368 = vmatpush1.msra.mxu0 0.0
    %369 = vmatprep.subr.mxu0 0.0
    %370 = vmatpush1.msra.mxu0 0.0
    %371 = vmatprep.subr.mxu0 0.0
    %372 = vmatpush1.msra.mxu0 0.0
    %373 = vmatprep.subr.mxu0 0.0
    %374 = vmatpush1.msra.mxu0 0.0
    %375 = vmatprep.subr.mxu0 0.0
    %376 = vmatpush1.msra.mxu0 0.0
    %377 = vmatprep.mubr.f32.mxu0 0.0
    %378 = vmatmul.mubr.f32.gmra.mrb[0].mxu0 %v311
    %v379 = vpop.f32.mrb[0].mxu0
    %v380 = vadd.f32 0.0, %v379
    %v381 = vpop.f32.mrb[0].mxu0
    %382 = vdwg.mxu0
    %v384 = vrot.slane %v380, 7
    %v387 = vadd.f32 %v164, %v384
    %v388 = vadd.f32 %v169, %v380
    %v389 = vxor.u32 %v387, 2147483648
    %v390 = vxor.u32 %v388, 2147483648
    %v391 = vmul.f32 %v389, 1.442695
    %v392 = vpow.pop %v391
    %v393 = vmul.f32 %v390, 1.442695
    %v394 = vpow.pop %v393
    %v395 = vadd.f32 %v392, 1.0
    %v396 = vadd.f32 %v394, 1.0
    %v397 = vrcp.pop %v395
    %v398 = vmul.f32 1.0, %v397
    %v399 = vrcp.pop %v396
    %v400 = vmul.f32 1.0, %v399
    %v401 = vtanh.pop %v387
    %v402 = vtanh.pop %v388
    %v405 = vrot.slane %v290, 7
    %v406 = vrot.slane %v291, 7
    %v409 = vmul.f32 %v398, %v405
    %v410 = vmul.f32 %v400, %v406
    %413 = vrot.lane.b32.xlu0 %v401, 32
    %v414 = vpop.permute.xlu0 %413
    %415 = vrot.lane.b32.xlu0 %v402, 32
    %v416 = vpop.permute.xlu0 %415
    %v419 = vmul.f32 %v398, %v414
    %v420 = vmul.f32 %v400, %v416
    %423 = vrot.lane.b32.xlu0 %v419, 32
    %v424 = vpop.permute.xlu0 %423
    %425 = vrot.lane.b32.xlu0 %v420, 32
    %v426 = vpop.permute.xlu0 %425
    %v429 = vadd.f32 %v409, %v424
    %v430 = vadd.f32 %v410, %v426
    %v431 = vtanh.pop %v429
    %v432 = vtanh.pop %v430
    %435 = vrot.lane.b32.xlu0 %v431, 32
    %v436 = vpop.permute.xlu0 %435
    %437 = vrot.lane.b32.xlu0 %v432, 32
    %v438 = vpop.permute.xlu0 %437
    %v441 = vmul.f32 %v398, %v436
    %v442 = vmul.f32 %v400, %v438
    %v445 = vrot.slane %v441, 1
    %v446 = vsel %vm307, %v442, %v445
    %447 = vrot.lane.b32.xlu0 %v446, 64
    %v448 = vpop.permute.xlu0 %447
    %v449 = vsel %vm176, %v448, 0
    %451 = vmatprep.subr.mxu0 0.0
    %452 = vmatpush1.msra.mxu0 %v172
    %453 = vmatprep.subr.mxu0 0.0
    %454 = vmatpush1.msra.mxu0 %v173
    %455 = vmatprep.subr.mxu0 0.0
    %456 = vmatpush1.msra.mxu0 %v174
    %457 = vmatprep.subr.mxu0 0.0
    %458 = vmatpush1.msra.mxu0 %v175
    %459 = vmatprep.subr.mxu0 0.0
    %460 = vmatpush1.msra.mxu0 0.0
    %461 = vmatprep.subr.mxu0 0.0
    %462 = vmatpush1.msra.mxu0 0.0
    %463 = vmatprep.subr.mxu0 0.0
    %464 = vmatpush1.msra.mxu0 0.0
    %465 = vmatprep.subr.mxu0 0.0
    %466 = vmatpush1.msra.mxu0 0.0
    %467 = vmatprep.subr.mxu0 0.0
    %468 = vmatpush1.msra.mxu0 0.0
    %469 = vmatprep.subr.mxu0 0.0
    %470 = vmatpush1.msra.mxu0 0.0
    %471 = vmatprep.subr.mxu0 0.0
    %472 = vmatpush1.msra.mxu0 0.0
    %473 = vmatprep.subr.mxu0 0.0
    %474 = vmatpush1.msra.mxu0 0.0
    %475 = vmatprep.subr.mxu0 0.0
    %476 = vmatpush1.msra.mxu0 0.0
    %477 = vmatprep.subr.mxu0 0.0
    %478 = vmatpush1.msra.mxu0 0.0
    %479 = vmatprep.subr.mxu0 0.0
    %480 = vmatpush1.msra.mxu0 0.0
    %481 = vmatprep.subr.mxu0 0.0
    %482 = vmatpush1.msra.mxu0 0.0
    %483 = vmatprep.subr.mxu0 0.0
    %484 = vmatpush1.msra.mxu0 0.0
    %485 = vmatprep.subr.mxu0 0.0
    %486 = vmatpush1.msra.mxu0 0.0
    %487 = vmatprep.subr.mxu0 0.0
    %488 = vmatpush1.msra.mxu0 0.0
    %489 = vmatprep.subr.mxu0 0.0
    %490 = vmatpush1.msra.mxu0 0.0
    %491 = vmatprep.subr.mxu0 0.0
    %492 = vmatpush1.msra.mxu0 0.0
    %493 = vmatprep.subr.mxu0 0.0
    %494 = vmatpush1.msra.mxu0 0.0
    %495 = vmatprep.subr.mxu0 0.0
    %496 = vmatpush1.msra.mxu0 0.0
    %497 = vmatprep.subr.mxu0 0.0
    %498 = vmatpush1.msra.mxu0 0.0
    %499 = vmatprep.subr.mxu0 0.0
    %500 = vmatpush1.msra.mxu0 0.0
    %501 = vmatprep.subr.mxu0 0.0
    %502 = vmatpush1.msra.mxu0 0.0
    %503 = vmatprep.subr.mxu0 0.0
    %504 = vmatpush1.msra.mxu0 0.0
    %505 = vmatprep.subr.mxu0 0.0
    %506 = vmatpush1.msra.mxu0 0.0
    %507 = vmatprep.subr.mxu0 0.0
    %508 = vmatpush1.msra.mxu0 0.0
    %509 = vmatprep.subr.mxu0 0.0
    %510 = vmatpush1.msra.mxu0 0.0
    %511 = vmatprep.subr.mxu0 0.0
    %512 = vmatpush1.msra.mxu0 0.0
    %513 = vmatprep.subr.mxu0 0.0
    %514 = vmatpush1.msra.mxu0 0.0
    %515 = vmatprep.mubr.f32.mxu0 0.0
    %516 = vmatmul.mubr.f32.gmra.mrb[0].mxu0 %v449
    %v517 = vpop.f32.mrb[0].mxu0
    %v518 = vadd.f32 0.0, %v517
    %v519 = vpop.f32.mrb[0].mxu0
    %520 = vdwg.mxu0
    %v522 = vrot.slane %v518, 6
    %v523 = vrot.slane %v518, 7
    %v526 = vadd.f32 %v164, %v522
    %v527 = vadd.f32 %v169, %v523
    %v528 = vxor.u32 %v526, 2147483648
    %v529 = vxor.u32 %v527, 2147483648
    %v530 = vmul.f32 %v528, 1.442695
    %v531 = vpow.pop %v530
    %v532 = vmul.f32 %v529, 1.442695
    %v533 = vpow.pop %v532
    %v534 = vadd.f32 %v531, 1.0
    %v535 = vadd.f32 %v533, 1.0
    %v536 = vrcp.pop %v534
    %v537 = vmul.f32 1.0, %v536
    %v538 = vrcp.pop %v535
    %v539 = vmul.f32 1.0, %v538
    %v540 = vtanh.pop %v526
    %v541 = vtanh.pop %v527
    %v544 = vrot.slane %v429, 7
    %v545 = vrot.slane %v430, 7
    %v548 = vmul.f32 %v537, %v544
    %v549 = vmul.f32 %v539, %v545
    %552 = vrot.lane.b32.xlu0 %v540, 32
    %v553 = vpop.permute.xlu0 %552
    %554 = vrot.lane.b32.xlu0 %v541, 32
    %v555 = vpop.permute.xlu0 %554
    %v558 = vmul.f32 %v537, %v553
    %v559 = vmul.f32 %v539, %v555
    %562 = vrot.lane.b32.xlu0 %v558, 32
    %v563 = vpop.permute.xlu0 %562
    %564 = vrot.lane.b32.xlu0 %v559, 32
    %v565 = vpop.permute.xlu0 %564
    %v568 = vadd.f32 %v548, %v563
    %v569 = vadd.f32 %v549, %v565
    %v570 = vtanh.pop %v568
    %v571 = vtanh.pop %v569
    %574 = vrot.lane.b32.xlu0 %v570, 32
    %v575 = vpop.permute.xlu0 %574
    %576 = vrot.lane.b32.xlu0 %v571, 32
    %v577 = vpop.permute.xlu0 %576
    %v580 = vmul.f32 %v537, %v575
    %v581 = vmul.f32 %v539, %v577
    %v584 = vrot.slane %v580, 2
    %v585 = vrot.slane %v581, 1
    %v586 = vsel %vm307, %v585, %v584
    %587 = vrot.lane.b32.xlu0 %v586, 64
    %v588 = vpop.permute.xlu0 %587
    %v589 = vsel %vm176, %v588, 0
    %591 = vmatprep.subr.mxu0 0.0
    %592 = vmatpush1.msra.mxu0 %v172
    %593 = vmatprep.subr.mxu0 0.0
    %594 = vmatpush1.msra.mxu0 %v173
    %595 = vmatprep.subr.mxu0 0.0
    %596 = vmatpush1.msra.mxu0 %v174
    %597 = vmatprep.subr.mxu0 0.0
    %598 = vmatpush1.msra.mxu0 %v175
    %599 = vmatprep.subr.mxu0 0.0
    %600 = vmatpush1.msra.mxu0 0.0
    %601 = vmatprep.subr.mxu0 0.0
    %602 = vmatpush1.msra.mxu0 0.0
    %603 = vmatprep.subr.mxu0 0.0
    %604 = vmatpush1.msra.mxu0 0.0
    %605 = vmatprep.subr.mxu0 0.0
    %606 = vmatpush1.msra.mxu0 0.0
    %607 = vmatprep.subr.mxu0 0.0
    %608 = vmatpush1.msra.mxu0 0.0
    %609 = vmatprep.subr.mxu0 0.0
    %610 = vmatpush1.msra.mxu0 0.0
    %611 = vmatprep.subr.mxu0 0.0
    %612 = vmatpush1.msra.mxu0 0.0
    %613 = vmatprep.subr.mxu0 0.0
    %614 = vmatpush1.msra.mxu0 0.0
    %615 = vmatprep.subr.mxu0 0.0
    %616 = vmatpush1.msra.mxu0 0.0
    %617 = vmatprep.subr.mxu0 0.0
    %618 = vmatpush1.msra.mxu0 0.0
    %619 = vmatprep.subr.mxu0 0.0
    %620 = vmatpush1.msra.mxu0 0.0
    %621 = vmatprep.subr.mxu0 0.0
    %622 = vmatpush1.msra.mxu0 0.0
    %623 = vmatprep.subr.mxu0 0.0
    %624 = vmatpush1.msra.mxu0 0.0
    %625 = vmatprep.subr.mxu0 0.0
    %626 = vmatpush1.msra.mxu0 0.0
    %627 = vmatprep.subr.mxu0 0.0
    %628 = vmatpush1.msra.mxu0 0.0
    %629 = vmatprep.subr.mxu0 0.0
    %630 = vmatpush1.msra.mxu0 0.0
    %631 = vmatprep.subr.mxu0 0.0
    %632 = vmatpush1.msra.mxu0 0.0
    %633 = vmatprep.subr.mxu0 0.0
    %634 = vmatpush1.msra.mxu0 0.0
    %635 = vmatprep.subr.mxu0 0.0
    %636 = vmatpush1.msra.mxu0 0.0
    %637 = vmatprep.subr.mxu0 0.0
    %638 = vmatpush1.msra.mxu0 0.0
    %639 = vmatprep.subr.mxu0 0.0
    %640 = vmatpush1.msra.mxu0 0.0
    %641 = vmatprep.subr.mxu0 0.0
    %642 = vmatpush1.msra.mxu0 0.0
    %643 = vmatprep.subr.mxu0 0.0
    %644 = vmatpush1.msra.mxu0 0.0
    %645 = vmatprep.subr.mxu0 0.0
    %646 = vmatpush1.msra.mxu0 0.0
    %647 = vmatprep.subr.mxu0 0.0
    %648 = vmatpush1.msra.mxu0 0.0
    %649 = vmatprep.subr.mxu0 0.0
    %650 = vmatpush1.msra.mxu0 0.0
    %651 = vmatprep.subr.mxu0 0.0
    %652 = vmatpush1.msra.mxu0 0.0
    %653 = vmatprep.subr.mxu0 0.0
    %654 = vmatpush1.msra.mxu0 0.0
    %655 = vmatprep.mubr.f32.mxu0 0.0
    %656 = vmatmul.mubr.f32.gmra.mrb[0].mxu0 %v589
    %v657 = vpop.f32.mrb[0].mxu0
    %v658 = vadd.f32 0.0, %v657
    %v659 = vpop.f32.mrb[0].mxu0
    %660 = vdwg.mxu0
    %v662 = vrot.slane %v658, 5
    %v663 = vrot.slane %v658, 6
    %v666 = vadd.f32 %v164, %v662
    %v667 = vadd.f32 %v169, %v663
    %v668 = vxor.u32 %v666, 2147483648
    %v669 = vxor.u32 %v667, 2147483648
    %v670 = vmul.f32 %v668, 1.442695
    %v671 = vpow.pop %v670
    %v672 = vmul.f32 %v669, 1.442695
    %v673 = vpow.pop %v672
    %v674 = vadd.f32 %v671, 1.0
    %v675 = vadd.f32 %v673, 1.0
    %v676 = vrcp.pop %v674
    %v677 = vmul.f32 1.0, %v676
    %v678 = vrcp.pop %v675
    %v679 = vmul.f32 1.0, %v678
    %v680 = vtanh.pop %v666
    %v681 = vtanh.pop %v667
    %v684 = vrot.slane %v568, 7
    %v685 = vrot.slane %v569, 7
    %v688 = vmul.f32 %v677, %v684
    %v689 = vmul.f32 %v679, %v685
    %692 = vrot.lane.b32.xlu0 %v680, 32
    %v693 = vpop.permute.xlu0 %692
    %694 = vrot.lane.b32.xlu0 %v681, 32
    %v695 = vpop.permute.xlu0 %694
    %v698 = vmul.f32 %v677, %v693
    %v699 = vmul.f32 %v679, %v695
    %702 = vrot.lane.b32.xlu0 %v698, 32
    %v703 = vpop.permute.xlu0 %702
    %704 = vrot.lane.b32.xlu0 %v699, 32
    %v705 = vpop.permute.xlu0 %704
    %v708 = vadd.f32 %v688, %v703
    %v709 = vadd.f32 %v689, %v705
    %v710 = vtanh.pop %v708
    %v711 = vtanh.pop %v709
    %714 = vrot.lane.b32.xlu0 %v710, 32
    %v715 = vpop.permute.xlu0 %714
    %716 = vrot.lane.b32.xlu0 %v711, 32
    %v717 = vpop.permute.xlu0 %716
    %v720 = vmul.f32 %v677, %v715
    %v721 = vmul.f32 %v679, %v717
    %v724 = vrot.slane %v720, 3
    %v725 = vrot.slane %v721, 2
    %v726 = vsel %vm307, %v725, %v724
    %727 = vrot.lane.b32.xlu0 %v726, 64
    %v728 = vpop.permute.xlu0 %727
    %v729 = vsel %vm176, %v728, 0
    %731 = vmatprep.subr.mxu0 0.0
    %732 = vmatpush1.msra.mxu0 %v172
    %733 = vmatprep.subr.mxu0 0.0
    %734 = vmatpush1.msra.mxu0 %v173
    %735 = vmatprep.subr.mxu0 0.0
    %736 = vmatpush1.msra.mxu0 %v174
    %737 = vmatprep.subr.mxu0 0.0
    %738 = vmatpush1.msra.mxu0 %v175
    %739 = vmatprep.subr.mxu0 0.0
    %740 = vmatpush1.msra.mxu0 0.0
    %741 = vmatprep.subr.mxu0 0.0
    %742 = vmatpush1.msra.mxu0 0.0
    %743 = vmatprep.subr.mxu0 0.0
    %744 = vmatpush1.msra.mxu0 0.0
    %745 = vmatprep.subr.mxu0 0.0
    %746 = vmatpush1.msra.mxu0 0.0
    %747 = vmatprep.subr.mxu0 0.0
    %748 = vmatpush1.msra.mxu0 0.0
    %749 = vmatprep.subr.mxu0 0.0
    %750 = vmatpush1.msra.mxu0 0.0
    %751 = vmatprep.subr.mxu0 0.0
    %752 = vmatpush1.msra.mxu0 0.0
    %753 = vmatprep.subr.mxu0 0.0
    %754 = vmatpush1.msra.mxu0 0.0
    %755 = vmatprep.subr.mxu0 0.0
    %756 = vmatpush1.msra.mxu0 0.0
    %757 = vmatprep.subr.mxu0 0.0
    %758 = vmatpush1.msra.mxu0 0.0
    %759 = vmatprep.subr.mxu0 0.0
    %760 = vmatpush1.msra.mxu0 0.0
    %761 = vmatprep.subr.mxu0 0.0
    %762 = vmatpush1.msra.mxu0 0.0
    %763 = vmatprep.subr.mxu0 0.0
    %764 = vmatpush1.msra.mxu0 0.0
    %765 = vmatprep.subr.mxu0 0.0
    %766 = vmatpush1.msra.mxu0 0.0
    %767 = vmatprep.subr.mxu0 0.0
    %768 = vmatpush1.msra.mxu0 0.0
    %769 = vmatprep.subr.mxu0 0.0
    %770 = vmatpush1.msra.mxu0 0.0
    %771 = vmatprep.subr.mxu0 0.0
    %772 = vmatpush1.msra.mxu0 0.0
    %773 = vmatprep.subr.mxu0 0.0
    %774 = vmatpush1.msra.mxu0 0.0
    %775 = vmatprep.subr.mxu0 0.0
    %776 = vmatpush1.msra.mxu0 0.0
    %777 = vmatprep.subr.mxu0 0.0
    %778 = vmatpush1.msra.mxu0 0.0
    %779 = vmatprep.subr.mxu0 0.0
    %780 = vmatpush1.msra.mxu0 0.0
    %781 = vmatprep.subr.mxu0 0.0
    %782 = vmatpush1.msra.mxu0 0.0
    %783 = vmatprep.subr.mxu0 0.0
    %784 = vmatpush1.msra.mxu0 0.0
    %785 = vmatprep.subr.mxu0 0.0
    %786 = vmatpush1.msra.mxu0 0.0
    %787 = vmatprep.subr.mxu0 0.0
    %788 = vmatpush1.msra.mxu0 0.0
    %789 = vmatprep.subr.mxu0 0.0
    %790 = vmatpush1.msra.mxu0 0.0
    %791 = vmatprep.subr.mxu0 0.0
    %792 = vmatpush1.msra.mxu0 0.0
    %793 = vmatprep.subr.mxu0 0.0
    %794 = vmatpush1.msra.mxu0 0.0
    %795 = vmatprep.mubr.f32.mxu0 0.0
    %796 = vmatmul.mubr.f32.gmra.mrb[0].mxu0 %v729
    %v797 = vpop.f32.mrb[0].mxu0
    %v798 = vadd.f32 0.0, %v797
    %v799 = vpop.f32.mrb[0].mxu0
    %800 = vdwg.mxu0
    %v802 = vrot.slane %v798, 4
    %v803 = vrot.slane %v798, 5
    %v806 = vadd.f32 %v164, %v802
    %v807 = vadd.f32 %v169, %v803
    %v808 = vxor.u32 %v806, 2147483648
    %v809 = vxor.u32 %v807, 2147483648
    %v810 = vmul.f32 %v808, 1.442695
    %v811 = vpow.pop %v810
    %v812 = vmul.f32 %v809, 1.442695
    %v813 = vpow.pop %v812
    %v814 = vadd.f32 %v811, 1.0
    %v815 = vadd.f32 %v813, 1.0
    %v816 = vrcp.pop %v814
    %v817 = vmul.f32 1.0, %v816
    %v818 = vrcp.pop %v815
    %v819 = vmul.f32 1.0, %v818
    %v820 = vtanh.pop %v806
    %v821 = vtanh.pop %v807
    %v824 = vrot.slane %v708, 7
    %v825 = vrot.slane %v709, 7
    %v828 = vmul.f32 %v817, %v824
    %v829 = vmul.f32 %v819, %v825
    %832 = vrot.lane.b32.xlu0 %v820, 32
    %v833 = vpop.permute.xlu0 %832
    %834 = vrot.lane.b32.xlu0 %v821, 32
    %v835 = vpop.permute.xlu0 %834
    %v838 = vmul.f32 %v817, %v833
    %v839 = vmul.f32 %v819, %v835
    %842 = vrot.lane.b32.xlu0 %v838, 32
    %v843 = vpop.permute.xlu0 %842
    %844 = vrot.lane.b32.xlu0 %v839, 32
    %v845 = vpop.permute.xlu0 %844
    %v848 = vadd.f32 %v828, %v843
    %v849 = vadd.f32 %v829, %v845
    %v850 = vtanh.pop %v848
    %v851 = vtanh.pop %v849
    %854 = vrot.lane.b32.xlu0 %v850, 32
    %v855 = vpop.permute.xlu0 %854
    %856 = vrot.lane.b32.xlu0 %v851, 32
    %v857 = vpop.permute.xlu0 %856
    %v860 = vmul.f32 %v817, %v855
    %v861 = vmul.f32 %v819, %v857
    %v864 = vrot.slane %v860, 4
    %v865 = vrot.slane %v861, 3
    %v866 = vsel %vm307, %v865, %v864
    %867 = vrot.lane.b32.xlu0 %v866, 64
    %v868 = vpop.permute.xlu0 %867
    %v869 = vsel %vm176, %v868, 0
    %871 = vmatprep.subr.mxu0 0.0
    %872 = vmatpush1.msra.mxu0 %v172
    %873 = vmatprep.subr.mxu0 0.0
    %874 = vmatpush1.msra.mxu0 %v173
    %875 = vmatprep.subr.mxu0 0.0
    %876 = vmatpush1.msra.mxu0 %v174
    %877 = vmatprep.subr.mxu0 0.0
    %878 = vmatpush1.msra.mxu0 %v175
    %879 = vmatprep.subr.mxu0 0.0
    %880 = vmatpush1.msra.mxu0 0.0
    %881 = vmatprep.subr.mxu0 0.0
    %882 = vmatpush1.msra.mxu0 0.0
    %883 = vmatprep.subr.mxu0 0.0
    %884 = vmatpush1.msra.mxu0 0.0
    %885 = vmatprep.subr.mxu0 0.0
    %886 = vmatpush1.msra.mxu0 0.0
    %887 = vmatprep.subr.mxu0 0.0
    %888 = vmatpush1.msra.mxu0 0.0
    %889 = vmatprep.subr.mxu0 0.0
    %890 = vmatpush1.msra.mxu0 0.0
    %891 = vmatprep.subr.mxu0 0.0
    %892 = vmatpush1.msra.mxu0 0.0
    %893 = vmatprep.subr.mxu0 0.0
    %894 = vmatpush1.msra.mxu0 0.0
    %895 = vmatprep.subr.mxu0 0.0
    %896 = vmatpush1.msra.mxu0 0.0
    %897 = vmatprep.subr.mxu0 0.0
    %898 = vmatpush1.msra.mxu0 0.0
    %899 = vmatprep.subr.mxu0 0.0
    %900 = vmatpush1.msra.mxu0 0.0
    %901 = vmatprep.subr.mxu0 0.0
    %902 = vmatpush1.msra.mxu0 0.0
    %903 = vmatprep.subr.mxu0 0.0
    %904 = vmatpush1.msra.mxu0 0.0
    %905 = vmatprep.subr.mxu0 0.0
    %906 = vmatpush1.msra.mxu0 0.0
    %907 = vmatprep.subr.mxu0 0.0
    %908 = vmatpush1.msra.mxu0 0.0
    %909 = vmatprep.subr.mxu0 0.0
    %910 = vmatpush1.msra.mxu0 0.0
    %911 = vmatprep.subr.mxu0 0.0
    %912 = vmatpush1.msra.mxu0 0.0
    %913 = vmatprep.subr.mxu0 0.0
    %914 = vmatpush1.msra.mxu0 0.0
    %915 = vmatprep.subr.mxu0 0.0
    %916 = vmatpush1.msra.mxu0 0.0
    %917 = vmatprep.subr.mxu0 0.0
    %918 = vmatpush1.msra.mxu0 0.0
    %919 = vmatprep.subr.mxu0 0.0
    %920 = vmatpush1.msra.mxu0 0.0
    %921 = vmatprep.subr.mxu0 0.0
    %922 = vmatpush1.msra.mxu0 0.0
    %923 = vmatprep.subr.mxu0 0.0
    %924 = vmatpush1.msra.mxu0 0.0
    %925 = vmatprep.subr.mxu0 0.0
    %926 = vmatpush1.msra.mxu0 0.0
    %927 = vmatprep.subr.mxu0 0.0
    %928 = vmatpush1.msra.mxu0 0.0
    %929 = vmatprep.subr.mxu0 0.0
    %930 = vmatpush1.msra.mxu0 0.0
    %931 = vmatprep.subr.mxu0 0.0
    %932 = vmatpush1.msra.mxu0 0.0
    %933 = vmatprep.subr.mxu0 0.0
    %934 = vmatpush1.msra.mxu0 0.0
    %935 = vmatprep.mubr.f32.mxu0 0.0
    %936 = vmatmul.mubr.f32.gmra.mrb[0].mxu0 %v869
    %v937 = vpop.f32.mrb[0].mxu0
    %v938 = vadd.f32 0.0, %v937
    %v939 = vpop.f32.mrb[0].mxu0
    %940 = vdwg.mxu0
    %v942 = vrot.slane %v938, 3
    %v943 = vrot.slane %v938, 4
    %v946 = vadd.f32 %v164, %v942
    %v947 = vadd.f32 %v169, %v943
    %v948 = vxor.u32 %v946, 2147483648
    %v949 = vxor.u32 %v947, 2147483648
    %v950 = vmul.f32 %v948, 1.442695
    %v951 = vpow.pop %v950
    %v952 = vmul.f32 %v949, 1.442695
    %v953 = vpow.pop %v952
    %v954 = vadd.f32 %v951, 1.0
    %v955 = vadd.f32 %v953, 1.0
    %v956 = vrcp.pop %v954
    %v957 = vmul.f32 1.0, %v956
    %v958 = vrcp.pop %v955
    %v959 = vmul.f32 1.0, %v958
    %v960 = vtanh.pop %v946
    %v961 = vtanh.pop %v947
    %v964 = vrot.slane %v848, 7
    %v965 = vrot.slane %v849, 7
    %v968 = vmul.f32 %v957, %v964
    %v969 = vmul.f32 %v959, %v965
    %972 = vrot.lane.b32.xlu0 %v960, 32
    %v973 = vpop.permute.xlu0 %972
    %974 = vrot.lane.b32.xlu0 %v961, 32
    %v975 = vpop.permute.xlu0 %974
    %v978 = vmul.f32 %v957, %v973
    %v979 = vmul.f32 %v959, %v975
    %982 = vrot.lane.b32.xlu0 %v978, 32
    %v983 = vpop.permute.xlu0 %982
    %984 = vrot.lane.b32.xlu0 %v979, 32
    %v985 = vpop.permute.xlu0 %984
    %v988 = vadd.f32 %v968, %v983
    %v989 = vadd.f32 %v969, %v985
    %v990 = vtanh.pop %v988
    %v991 = vtanh.pop %v989
    %994 = vrot.lane.b32.xlu0 %v990, 32
    %v995 = vpop.permute.xlu0 %994
    %996 = vrot.lane.b32.xlu0 %v991, 32
    %v997 = vpop.permute.xlu0 %996
    %v1000 = vmul.f32 %v957, %v995
    %v1001 = vmul.f32 %v959, %v997
    %v1004 = vrot.slane %v1000, 5
    %v1005 = vrot.slane %v1001, 4
    %v1006 = vsel %vm307, %v1005, %v1004
    %1007 = vrot.lane.b32.xlu0 %v1006, 64
    %v1008 = vpop.permute.xlu0 %1007
    %v1009 = vsel %vm176, %v1008, 0
    %1011 = vmatprep.subr.mxu0 0.0
    %1012 = vmatpush1.msra.mxu0 %v172
    %1013 = vmatprep.subr.mxu0 0.0
    %1014 = vmatpush1.msra.mxu0 %v173
    %1015 = vmatprep.subr.mxu0 0.0
    %1016 = vmatpush1.msra.mxu0 %v174
    %1017 = vmatprep.subr.mxu0 0.0
    %1018 = vmatpush1.msra.mxu0 %v175
    %1019 = vmatprep.subr.mxu0 0.0
    %1020 = vmatpush1.msra.mxu0 0.0
    %1021 = vmatprep.subr.mxu0 0.0
    %1022 = vmatpush1.msra.mxu0 0.0
    %1023 = vmatprep.subr.mxu0 0.0
    %1024 = vmatpush1.msra.mxu0 0.0
    %1025 = vmatprep.subr.mxu0 0.0
    %1026 = vmatpush1.msra.mxu0 0.0
    %1027 = vmatprep.subr.mxu0 0.0
    %1028 = vmatpush1.msra.mxu0 0.0
    %1029 = vmatprep.subr.mxu0 0.0
    %1030 = vmatpush1.msra.mxu0 0.0
    %1031 = vmatprep.subr.mxu0 0.0
    %1032 = vmatpush1.msra.mxu0 0.0
    %1033 = vmatprep.subr.mxu0 0.0
    %1034 = vmatpush1.msra.mxu0 0.0
    %1035 = vmatprep.subr.mxu0 0.0
    %1036 = vmatpush1.msra.mxu0 0.0
    %1037 = vmatprep.subr.mxu0 0.0
    %1038 = vmatpush1.msra.mxu0 0.0
    %1039 = vmatprep.subr.mxu0 0.0
    %1040 = vmatpush1.msra.mxu0 0.0
    %1041 = vmatprep.subr.mxu0 0.0
    %1042 = vmatpush1.msra.mxu0 0.0
    %1043 = vmatprep.subr.mxu0 0.0
    %1044 = vmatpush1.msra.mxu0 0.0
    %1045 = vmatprep.subr.mxu0 0.0
    %1046 = vmatpush1.msra.mxu0 0.0
    %1047 = vmatprep.subr.mxu0 0.0
    %1048 = vmatpush1.msra.mxu0 0.0
    %1049 = vmatprep.subr.mxu0 0.0
    %1050 = vmatpush1.msra.mxu0 0.0
    %1051 = vmatprep.subr.mxu0 0.0
    %1052 = vmatpush1.msra.mxu0 0.0
    %1053 = vmatprep.subr.mxu0 0.0
    %1054 = vmatpush1.msra.mxu0 0.0
    %1055 = vmatprep.subr.mxu0 0.0
    %1056 = vmatpush1.msra.mxu0 0.0
    %1057 = vmatprep.subr.mxu0 0.0
    %1058 = vmatpush1.msra.mxu0 0.0
    %1059 = vmatprep.subr.mxu0 0.0
    %1060 = vmatpush1.msra.mxu0 0.0
    %1061 = vmatprep.subr.mxu0 0.0
    %1062 = vmatpush1.msra.mxu0 0.0
    %1063 = vmatprep.subr.mxu0 0.0
    %1064 = vmatpush1.msra.mxu0 0.0
    %1065 = vmatprep.subr.mxu0 0.0
    %1066 = vmatpush1.msra.mxu0 0.0
    %1067 = vmatprep.subr.mxu0 0.0
    %1068 = vmatpush1.msra.mxu0 0.0
    %1069 = vmatprep.subr.mxu0 0.0
    %1070 = vmatpush1.msra.mxu0 0.0
    %1071 = vmatprep.subr.mxu0 0.0
    %1072 = vmatpush1.msra.mxu0 0.0
    %1073 = vmatprep.subr.mxu0 0.0
    %1074 = vmatpush1.msra.mxu0 0.0
    %1075 = vmatprep.mubr.f32.mxu0 0.0
    %1076 = vmatmul.mubr.f32.gmra.mrb[0].mxu0 %v1009
    %v1077 = vpop.f32.mrb[0].mxu0
    %v1078 = vadd.f32 0.0, %v1077
    %v1079 = vpop.f32.mrb[0].mxu0
    %1080 = vdwg.mxu0
    %v1082 = vrot.slane %v1078, 2
    %v1083 = vrot.slane %v1078, 3
    %v1086 = vadd.f32 %v164, %v1082
    %v1087 = vadd.f32 %v169, %v1083
    %v1088 = vxor.u32 %v1086, 2147483648
    %v1089 = vxor.u32 %v1087, 2147483648
    %v1090 = vmul.f32 %v1088, 1.442695
    %v1091 = vpow.pop %v1090
    %v1092 = vmul.f32 %v1089, 1.442695
    %v1093 = vpow.pop %v1092
    %v1094 = vadd.f32 %v1091, 1.0
    %v1095 = vadd.f32 %v1093, 1.0
    %v1096 = vrcp.pop %v1094
    %v1097 = vmul.f32 1.0, %v1096
    %v1098 = vrcp.pop %v1095
    %v1099 = vmul.f32 1.0, %v1098
    %v1100 = vtanh.pop %v1086
    %v1101 = vtanh.pop %v1087
    %v1104 = vrot.slane %v988, 7
    %v1105 = vrot.slane %v989, 7
    %v1108 = vmul.f32 %v1097, %v1104
    %v1109 = vmul.f32 %v1099, %v1105
    %1112 = vrot.lane.b32.xlu0 %v1100, 32
    %v1113 = vpop.permute.xlu0 %1112
    %1114 = vrot.lane.b32.xlu0 %v1101, 32
    %v1115 = vpop.permute.xlu0 %1114
    %v1118 = vmul.f32 %v1097, %v1113
    %v1119 = vmul.f32 %v1099, %v1115
    %1122 = vrot.lane.b32.xlu0 %v1118, 32
    %v1123 = vpop.permute.xlu0 %1122
    %1124 = vrot.lane.b32.xlu0 %v1119, 32
    %v1125 = vpop.permute.xlu0 %1124
    %v1128 = vadd.f32 %v1108, %v1123
    %v1129 = vadd.f32 %v1109, %v1125
    %v1130 = vtanh.pop %v1128
    %v1131 = vtanh.pop %v1129
    %1134 = vrot.lane.b32.xlu0 %v1130, 32
    %v1135 = vpop.permute.xlu0 %1134
    %1136 = vrot.lane.b32.xlu0 %v1131, 32
    %v1137 = vpop.permute.xlu0 %1136
    %v1140 = vmul.f32 %v1097, %v1135
    %v1141 = vmul.f32 %v1099, %v1137
    %v1144 = vrot.slane %v1140, 6
    %v1145 = vrot.slane %v1141, 5
    %v1146 = vsel %vm307, %v1145, %v1144
    %1147 = vrot.lane.b32.xlu0 %v1146, 64
    %v1148 = vpop.permute.xlu0 %1147
    %v1149 = vsel %vm176, %v1148, 0
    %1151 = vmatprep.subr.mxu0 0.0
    %1152 = vmatpush1.msra.mxu0 %v172
    %1153 = vmatprep.subr.mxu0 0.0
    %1154 = vmatpush1.msra.mxu0 %v173
    %1155 = vmatprep.subr.mxu0 0.0
    %1156 = vmatpush1.msra.mxu0 %v174
    %1157 = vmatprep.subr.mxu0 0.0
    %1158 = vmatpush1.msra.mxu0 %v175
    %1159 = vmatprep.subr.mxu0 0.0
    %1160 = vmatpush1.msra.mxu0 0.0
    %1161 = vmatprep.subr.mxu0 0.0
    %1162 = vmatpush1.msra.mxu0 0.0
    %1163 = vmatprep.subr.mxu0 0.0
    %1164 = vmatpush1.msra.mxu0 0.0
    %1165 = vmatprep.subr.mxu0 0.0
    %1166 = vmatpush1.msra.mxu0 0.0
    %1167 = vmatprep.subr.mxu0 0.0
    %1168 = vmatpush1.msra.mxu0 0.0
    %1169 = vmatprep.subr.mxu0 0.0
    %1170 = vmatpush1.msra.mxu0 0.0
    %1171 = vmatprep.subr.mxu0 0.0
    %1172 = vmatpush1.msra.mxu0 0.0
    %1173 = vmatprep.subr.mxu0 0.0
    %1174 = vmatpush1.msra.mxu0 0.0
    %1175 = vmatprep.subr.mxu0 0.0
    %1176 = vmatpush1.msra.mxu0 0.0
    %1177 = vmatprep.subr.mxu0 0.0
    %1178 = vmatpush1.msra.mxu0 0.0
    %1179 = vmatprep.subr.mxu0 0.0
    %1180 = vmatpush1.msra.mxu0 0.0
    %1181 = vmatprep.subr.mxu0 0.0
    %1182 = vmatpush1.msra.mxu0 0.0
    %1183 = vmatprep.subr.mxu0 0.0
    %1184 = vmatpush1.msra.mxu0 0.0
    %1185 = vmatprep.subr.mxu0 0.0
    %1186 = vmatpush1.msra.mxu0 0.0
    %1187 = vmatprep.subr.mxu0 0.0
    %1188 = vmatpush1.msra.mxu0 0.0
    %1189 = vmatprep.subr.mxu0 0.0
    %1190 = vmatpush1.msra.mxu0 0.0
    %1191 = vmatprep.subr.mxu0 0.0
    %1192 = vmatpush1.msra.mxu0 0.0
    %1193 = vmatprep.subr.mxu0 0.0
    %1194 = vmatpush1.msra.mxu0 0.0
    %1195 = vmatprep.subr.mxu0 0.0
    %1196 = vmatpush1.msra.mxu0 0.0
    %1197 = vmatprep.subr.mxu0 0.0
    %1198 = vmatpush1.msra.mxu0 0.0
    %1199 = vmatprep.subr.mxu0 0.0
    %1200 = vmatpush1.msra.mxu0 0.0
    %1201 = vmatprep.subr.mxu0 0.0
    %1202 = vmatpush1.msra.mxu0 0.0
    %1203 = vmatprep.subr.mxu0 0.0
    %1204 = vmatpush1.msra.mxu0 0.0
    %1205 = vmatprep.subr.mxu0 0.0
    %1206 = vmatpush1.msra.mxu0 0.0
    %1207 = vmatprep.subr.mxu0 0.0
    %1208 = vmatpush1.msra.mxu0 0.0
    %1209 = vmatprep.subr.mxu0 0.0
    %1210 = vmatpush1.msra.mxu0 0.0
    %1211 = vmatprep.subr.mxu0 0.0
    %1212 = vmatpush1.msra.mxu0 0.0
    %1213 = vmatprep.subr.mxu0 0.0
    %1214 = vmatpush1.msra.mxu0 0.0
    %1215 = vmatprep.mubr.f32.mxu0 0.0
    %1216 = vmatmul.mubr.f32.gmra.mrb[0].mxu0 %v1149
    %v1217 = vpop.f32.mrb[0].mxu0
    %v1218 = vadd.f32 0.0, %v1217
    %v1219 = vpop.f32.mrb[0].mxu0
    %1220 = vdwg.mxu0
    %v1222 = vrot.slane %v1218, 1
    %v1223 = vrot.slane %v1218, 2
    %v1226 = vadd.f32 %v164, %v1222
    %v1227 = vadd.f32 %v169, %v1223
    %v1228 = vxor.u32 %v1226, 2147483648
    %v1229 = vxor.u32 %v1227, 2147483648
    %v1230 = vmul.f32 %v1228, 1.442695
    %v1231 = vpow.pop %v1230
    %v1232 = vmul.f32 %v1229, 1.442695
    %v1233 = vpow.pop %v1232
    %v1234 = vadd.f32 %v1231, 1.0
    %v1235 = vadd.f32 %v1233, 1.0
    %v1236 = vrcp.pop %v1234
    %v1237 = vmul.f32 1.0, %v1236
    %v1238 = vrcp.pop %v1235
    %v1239 = vmul.f32 1.0, %v1238
    %v1240 = vtanh.pop %v1226
    %v1241 = vtanh.pop %v1227
    %v1244 = vrot.slane %v1128, 7
    %v1245 = vrot.slane %v1129, 7
    %v1248 = vmul.f32 %v1237, %v1244
    %v1249 = vmul.f32 %v1239, %v1245
    %1252 = vrot.lane.b32.xlu0 %v1240, 32
    %v1253 = vpop.permute.xlu0 %1252
    %1254 = vrot.lane.b32.xlu0 %v1241, 32
    %v1255 = vpop.permute.xlu0 %1254
    %v1258 = vmul.f32 %v1237, %v1253
    %v1259 = vmul.f32 %v1239, %v1255
    %1262 = vrot.lane.b32.xlu0 %v1258, 32
    %v1263 = vpop.permute.xlu0 %1262
    %1264 = vrot.lane.b32.xlu0 %v1259, 32
    %v1265 = vpop.permute.xlu0 %1264
    %v1268 = vadd.f32 %v1248, %v1263
    %v1269 = vadd.f32 %v1249, %v1265
    %v1270 = vtanh.pop %v1268
    %v1271 = vtanh.pop %v1269
    %1274 = vrot.lane.b32.xlu0 %v1270, 32
    %v1275 = vpop.permute.xlu0 %1274
    %1276 = vrot.lane.b32.xlu0 %v1271, 32
    %v1277 = vpop.permute.xlu0 %1276
    %v1280 = vmul.f32 %v1237, %v1275
    %v1281 = vmul.f32 %v1239, %v1277
    %v1282 = vld [vmem:[#allocation8] sm:$0xff]
    %v1283 = vld [vmem:[#allocation8 + $0x8] sm:$0xff]
    %v1284 = vld [vmem:[#allocation8 + $0x10] sm:$0xff]
    %v1285 = vld [vmem:[#allocation8 + $0x18] sm:$0xff]
    %v1286 = vld [vmem:[%s5] sm:$0x1]
    %v1288 = vlaneseq
    %v1289 = vshrl.u32 %v1288, 7
    %v1290 = vsub.s32 0, %v1289
    %v1291 = vrot.slane %v1286, %v1290
    %v1295 = vrot.slane %v1280, 7
    %v1296 = vrot.slane %v1281, 6
    %v1297 = vsel %vm307, %v1296, %v1295
    %1298 = vrot.lane.b32.xlu0 %v1297, 64
    %v1299 = vpop.permute.xlu0 %1298
    %v1300 = vsel %vm176, %v1299, 0
    %1302 = vmatprep.subr.mxu0 0.0
    %1303 = vmatpush1.msra.mxu0 %v1282
    %1304 = vmatprep.subr.mxu0 0.0
    %1305 = vmatpush1.msra.mxu0 %v1283
    %1306 = vmatprep.subr.mxu0 0.0
    %1307 = vmatpush1.msra.mxu0 %v1284
    %1308 = vmatprep.subr.mxu0 0.0
    %1309 = vmatpush1.msra.mxu0 %v1285
    %1310 = vmatprep.subr.mxu0 0.0
    %1311 = vmatpush1.msra.mxu0 0.0
    %1312 = vmatprep.subr.mxu0 0.0
    %1313 = vmatpush1.msra.mxu0 0.0
    %1314 = vmatprep.subr.mxu0 0.0
    %1315 = vmatpush1.msra.mxu0 0.0
    %1316 = vmatprep.subr.mxu0 0.0
    %1317 = vmatpush1.msra.mxu0 0.0
    %1318 = vmatprep.subr.mxu0 0.0
    %1319 = vmatpush1.msra.mxu0 0.0
    %1320 = vmatprep.subr.mxu0 0.0
    %1321 = vmatpush1.msra.mxu0 0.0
    %1322 = vmatprep.subr.mxu0 0.0
    %1323 = vmatpush1.msra.mxu0 0.0
    %1324 = vmatprep.subr.mxu0 0.0
    %1325 = vmatpush1.msra.mxu0 0.0
    %1326 = vmatprep.subr.mxu0 0.0
    %1327 = vmatpush1.msra.mxu0 0.0
    %1328 = vmatprep.subr.mxu0 0.0
    %1329 = vmatpush1.msra.mxu0 0.0
    %1330 = vmatprep.subr.mxu0 0.0
    %1331 = vmatpush1.msra.mxu0 0.0
    %1332 = vmatprep.subr.mxu0 0.0
    %1333 = vmatpush1.msra.mxu0 0.0
    %1334 = vmatprep.subr.mxu0 0.0
    %1335 = vmatpush1.msra.mxu0 0.0
    %1336 = vmatprep.subr.mxu0 0.0
    %1337 = vmatpush1.msra.mxu0 0.0
    %1338 = vmatprep.subr.mxu0 0.0
    %1339 = vmatpush1.msra.mxu0 0.0
    %1340 = vmatprep.subr.mxu0 0.0
    %1341 = vmatpush1.msra.mxu0 0.0
    %1342 = vmatprep.subr.mxu0 0.0
    %1343 = vmatpush1.msra.mxu0 0.0
    %1344 = vmatprep.subr.mxu0 0.0
    %1345 = vmatpush1.msra.mxu0 0.0
    %1346 = vmatprep.subr.mxu0 0.0
    %1347 = vmatpush1.msra.mxu0 0.0
    %1348 = vmatprep.subr.mxu0 0.0
    %1349 = vmatpush1.msra.mxu0 0.0
    %1350 = vmatprep.subr.mxu0 0.0
    %1351 = vmatpush1.msra.mxu0 0.0
    %1352 = vmatprep.subr.mxu0 0.0
    %1353 = vmatpush1.msra.mxu0 0.0
    %1354 = vmatprep.subr.mxu0 0.0
    %1355 = vmatpush1.msra.mxu0 0.0
    %1356 = vmatprep.subr.mxu0 0.0
    %1357 = vmatpush1.msra.mxu0 0.0
    %1358 = vmatprep.subr.mxu0 0.0
    %1359 = vmatpush1.msra.mxu0 0.0
    %1360 = vmatprep.subr.mxu0 0.0
    %1361 = vmatpush1.msra.mxu0 0.0
    %1362 = vmatprep.subr.mxu0 0.0
    %1363 = vmatpush1.msra.mxu0 0.0
    %1364 = vmatprep.subr.mxu0 0.0
    %1365 = vmatpush1.msra.mxu0 0.0
    %1366 = vmatprep.mubr.f32.mxu0 0.0
    %1367 = vmatmul.mubr.f32.gmra.mrb[0].mxu0 %v1300
    %v1368 = vpop.f32.mrb[0].mxu0
    %v1369 = vadd.f32 %v1291, %v1368
    %v1370 = vpop.f32.mrb[0].mxu0
    %1371 = vdwg.mxu0
    %1372 = vst [vmem:[#allocation10] sm:$0x3] %v1369
    // Predicated region
    $region42: #{tpu_custom_call.1} parent=1 // pred_check
      _
    $region43: #{tpu_custom_call.1} parent=1 // pred_check_branch
      %1374 = sbr.rel (0) target = $region45
    $region44: #{tpu_custom_call.1} parent=1 // pred_region
      %s1376 = ssub.s32 32, 32
      %1377 = vsyncadd [#allocation4], %s1376
      %s1379 = sshll.u32 [#allocation10], 4
      %s1380 = int_to_ptr.vmem [resolvable:$true] %s1379
      %1382 = dma.vmem_to_hbm [thread:$0]  %s1380, 32, %s6, [#allocation4]
    $region45: #{tpu_custom_call.1} parent=1 // pred_fallthru
      _
    // Predicated region
    $region46: #{tpu_custom_call.1} parent=1 // pred_check
      _
    $region47: #{tpu_custom_call.1} parent=1 // pred_check_branch
      %1384 = sbr.rel (0) target = $region49
    $region48: #{tpu_custom_call.1} parent=1 // pred_region
      %1385 = dma.done [#allocation4], 32
    $region49: #{tpu_custom_call.1} parent=1 // pred_fallthru
      _
    %1386 = vsyncpa [#allocation3], 1
    %1387 = vsyncpa [#allocation6], 1
    %1388 = vsyncpa [#allocation9], 1
    %1389 = vsyncpa [#allocation4], 1

</llo_original>
